<compile_context>
chip_gen: v7x
topology: tpu7x:2x2x1
jax: 0.10.0
libtpu: 0.0.40
codegen_flags: <defaults>
</compile_context>

<pallas_src>
import functools

import jax
import jax.numpy as jnp
from jax import lax
from jax.experimental import pallas as pl
from jax.experimental.pallas import tpu as pltpu

D = 20                       # per-stream feature dim (p / v)
N_ROWS = 2                   # conv2d H: row 0 = p, row 1 = v
N_CH = 8                     # channels per conv2d subnet
N_SUB = 4                    # number of conv2d subnets
N_STAGES = (1, 2, 3, 4)      # depthwise conv stages per subnet (1 + dilation_num)
STAGE_BASE = (0, 1, 3, 6)    # global depthwise-stage offset per subnet
TOTAL_STAGES = sum(N_STAGES)
TIME_IDX = (1, 2, 4, 5, 7, 8, 10, 11)
BN_EPS = 1e-5

NCH_TOT = N_SUB * N_CH       # 32 (subnet, channel) pairs packed on the lane axis
GRP_W = D + 4                # 24 lanes / channel in the wrapper-side fold (2-lane zero pads)
PAD_W = NCH_TOT * GRP_W      # 768 padded lanes (wrapper only)
PACK_W = NCH_TOT * D         # 640 packed lanes per conv2d H-row
FUSED_W = N_ROWS * PACK_W    # 1280 lanes: both H-rows fused on the lane axis
X_W = 6 * D + len(TIME_IDX)  # 128 = 3 p-taps + 3 v-taps + 8 time feats
OUT_W = N_ROWS * D           # 40 output features per (b, t)


def _mish(x):
    # Mish = x * tanh(softplus(x)), single-exp EUP form (perf review):
    #   u = exp(-|x|)                                   (never exp(x): no overflow)
    #   x <= 0: tanh(sp) = u*(u+2) / (u*(u+2) + 2)
    #   x >  0: tanh(sp) = (1+2u)  / (1 + 2u + 2u*u)
    # 1 exp + 1 approx-reciprocal on the EUP; the select/mul/Newton step go to
    # the VPU, which has slack.
    u = jnp.exp(-jnp.abs(x))
    pos = x > 0.0
    num = jnp.where(pos, 1.0 + 2.0 * u, u * (u + 2.0))
    den = num + jnp.where(pos, 2.0 * u * u, 2.0)
    r = pl.reciprocal(den, approx=True)
    r = r * (2.0 - den * r)          # one Newton step (VPU, ~free): error^2
    return x * num * r


def cnn_extractor_kernel(x_ref, k_ref, a_ref, p_ref, ob_ref, out_ref,
                         *, b_blk, t_pad):
    X = x_ref[...]                                                   # (rows, 128)
    # Whole affine pre-Mish pipeline folded into one lane-dense (128 -> 1280)
    # MXU contraction; K is the per-timestep constant, broadcast over the
    # b_blk items in this block (leading-dims-only reshape = layout free).
    pre = jnp.dot(X, a_ref[...], preferred_element_type=jnp.float32)  # (rows, 1280)
    if b_blk == 1:
        y = _mish(pre + k_ref[...])
    else:
        pre = pre.reshape(b_blk, t_pad, FUSED_W) + k_ref[...][None, :, :]
        y = _mish(pre).reshape(b_blk * t_pad, FUSED_W)
    # conv_down (Conv2d(32,1,1)) as a single (1280, 40) MXU projection, writing
    # the final `b t (c n d)` layout directly.
    out_ref[...] = (jnp.dot(y, p_ref[...], preferred_element_type=jnp.float32)
                    + ob_ref[...])


def _pack_params(params, t):
    """Fold the affine pre-Mish pipeline into A (128,1280), K (t,1280), P (1280,40)."""
    f32 = jnp.float32
    eye = jnp.eye(D, dtype=f32)
    feat = jnp.pad(jnp.ones((D,), f32), (2, 2))                  # (24,) 1 on feature lanes
    grp_eye = jnp.pad(eye, ((0, 0), (2, 2)))                     # (20,24): [d, 2+d] = 1

    pw = params['pw_w'].reshape(NCH_TOT).astype(f32)
    pwb = params['pw_b'].reshape(NCH_TOT).astype(f32)
    # E replicates a 20-wide row into the 32x24 padded lane layout and folds the
    # Conv2d(1,8,1) pointwise weight per channel.
    E = (grp_eye[:, None, :] * pw[None, :, None]).reshape(D, PAD_W)      # (20, 768)
    pwb_vec = (pwb[:, None] * feat[None, :]).reshape(PAD_W)

    # Causal Conv1d(20,20,3) taps + Linear(8,20) fused into one (128,20) map/stream.
    w1p = jnp.transpose(params['conv1d_p_w'].astype(f32), (2, 1, 0))     # (3, in, out)
    w1v = jnp.transpose(params['conv1d_v_w'].astype(f32), (2, 1, 0))
    wl = params['mlp_w'].astype(f32).T                                   # (8, 20)
    z60 = jnp.zeros((3 * D, D), f32)
    Wcat0 = jnp.concatenate([w1p[0], w1p[1], w1p[2], z60, wl], axis=0)   # (128, 20)
    Wcat1 = jnp.concatenate([z60, w1v[0], w1v[1], w1v[2], wl], axis=0)
    M0 = Wcat0 @ E                                                       # (128, 768)
    M1 = Wcat1 @ E

    emb = params['emb'].astype(f32)                                      # (20, 2t)
    pos_p, pos_v = emb[:, 0::2].T, emb[:, 1::2].T                        # (t, 20)
    b0 = params['conv1d_p_b'].astype(f32) + params['mlp_b'].astype(f32)
    b1 = params['conv1d_v_b'].astype(f32) + params['mlp_b'].astype(f32)
    C0 = (pos_p + b0[None, :]) @ E + pwb_vec[None, :]                    # (t, 768)
    C1 = (pos_v + b1[None, :]) @ E + pwb_vec[None, :]

    # Depthwise Conv2d(8,8,(2,3),groups=8) stacks as (stage, tap, lane) vectors.
    dw_w = params['dw_w'].astype(f32)                                    # (10, 8, 2, 3)
    dw_b = params['dw_b'].astype(f32)                                    # (10, 8)
    ident = jnp.zeros((N_CH, 2, 3), f32).at[:, 0, 1].set(1.0)            # pass-through tap
    DWW, DWB = [], []
    for j in range(N_SUB):       # 4 stage slots; shorter subnets get identity stages
        wj, bj = [], []
        for s in range(N_SUB):
            if j < N_STAGES[s]:
                g = STAGE_BASE[s] + j
                wj.append(dw_w[g]); bj.append(dw_b[g])
            else:
                wj.append(ident); bj.append(jnp.zeros((N_CH,), f32))
        wj = jnp.stack(wj, 0).reshape(NCH_TOT, 6)                        # tap = kh*3+kw
        bj = jnp.stack(bj, 0).reshape(NCH_TOT)
        DWW.append(jnp.transpose(wj[:, :, None] * feat[None, None, :],
                                 (1, 0, 2)).reshape(6, PAD_W))
        DWB.append((bj[:, None] * feat[None, :]).reshape(PAD_W))

    def stages(y0, y1, with_bias):
        # Runs the depthwise stacks on the padded lane layout (wrapper side, plain
        # jnp).  Pad lanes stay zero, so roll wrap-around never leaks across groups.
        for j in range(N_SUB):
            dil = 1 if j == 0 else 2
            w = DWW[j]
            b = DWB[j] if with_bias else 0.0
            r0m, r0p = jnp.roll(y0, dil, axis=-1), jnp.roll(y0, -dil, axis=-1)
            r1m, r1p = jnp.roll(y1, dil, axis=-1), jnp.roll(y1, -dil, axis=-1)
            o0 = (r0m * w[0] + y0 * w[1] + r0p * w[2]
                  + r1m * w[3] + y1 * w[4] + r1p * w[5] + b)
            o1 = r1m * w[0] + y1 * w[1] + r1p * w[2] + b   # bottom H row is zero-padded
            y0, y1 = o0, o1
        return y0, y1

    # Affine fold: final pre-BN state = X @ A + K[t].
    A0, A1 = stages(M0, M1, with_bias=False)            # linear part    (128, 768)
    K0, K1 = stages(C0, C1, with_bias=True)             # constant part  (t, 768)

    def drop_pads(a):
        return a.reshape(a.shape[0], NCH_TOT, GRP_W)[:, :, 2:2 + D].reshape(a.shape[0], PACK_W)

    A0, A1, K0, K1 = map(drop_pads, (A0, A1, K0, K1))

    # Fold eval-mode BatchNorm2d into the same affine map.
    inv = 1.0 / jnp.sqrt(params['bn_var'].astype(f32) + BN_EPS)
    sc = (params['bn_gamma'].astype(f32) * inv).reshape(NCH_TOT)
    sh = (params['bn_beta'].astype(f32)
          - params['bn_mean'].astype(f32) * params['bn_gamma'].astype(f32) * inv
          ).reshape(NCH_TOT)
    sc = jnp.repeat(sc, D)                               # (640,) lane-broadcast
    sh = jnp.repeat(sh, D)
    A0, A1 = A0 * sc[None, :], A1 * sc[None, :]
    K0, K1 = K0 * sc[None, :] + sh[None, :], K1 * sc[None, :] + sh[None, :]

    # conv_down (Conv2d(32,1,1)) as a (1280, 40) projection matrix.
    dwn = params['down_w'].reshape(NCH_TOT).astype(f32)
    P = (dwn[:, None, None] * eye[None, :, :]).reshape(PACK_W, D)
    zp = jnp.zeros((PACK_W, D), f32)
    P0 = jnp.concatenate([P, zp], axis=1)                # output lanes 0..19  (H row 0)
    P1 = jnp.concatenate([zp, P], axis=1)                # output lanes 20..39 (H row 1)
    OB = params['down_b'].astype(f32).reshape(1, 1) * jnp.ones((1, OUT_W), f32)

    # Fuse the two H-row branches: one dot, one Mish, one down-projection.
    A = jnp.concatenate([A0, A1], axis=1)                # (128, 1280)
    K = jnp.concatenate([K0, K1], axis=1)                # (t,   1280)
    Pf = jnp.concatenate([P0, P1], axis=0)               # (1280, 40)
    return A, K, Pf, OB


def cnn_extractor_forward(x, params, rows_per_block=1024):
    b, t, f = x.shape
    assert f == 52
    x = x.astype(jnp.float32)
    p, v, time = x[..., :D], x[..., D:2 * D], x[..., 2 * D:]
    ts = time[..., jnp.array(TIME_IDX)]                               # (b, t, 8)

    def causal_shift(a, k):                                           # a[:, t-k], zeros for t<k
        return jnp.pad(a, ((0, 0), (k, 0), (0, 0)))[:, :t, :]

    # One fused (b, t, 128) kernel input: the 3 causal Conv1d taps of each stream
    # plus the selected time features -> a single MXU contraction in the kernel.
    X = jnp.concatenate([causal_shift(p, 2), causal_shift(p, 1), p,
                         causal_shift(v, 2), causal_shift(v, 1), v, ts], axis=-1)

    A, K, P, OB = _pack_params(params, t)

    # Batch-block the grid; keep >= 2 grid steps when b > 1 so the "parallel"
    # axis can shard across the two v7x TensorCores.
    t_pad = ((t + 7) // 8) * 8
    b_blk = max(1, min(b, rows_per_block // t_pad))
    if b > 1:
        b_blk = min(b_blk, (b + 1) // 2)
    n_steps = -(-b // b_blk)
    b_pad = n_steps * b_blk
    rows = b_blk * t_pad

    X = jnp.pad(X, ((0, b_pad - b), (0, t_pad - t), (0, 0))).reshape(b_pad * t_pad, X_W)
    K = jnp.pad(K, ((0, t_pad - t), (0, 0)))                          # (t_pad, 1280), NOT tiled

    def const_spec(a):
        nd = a.ndim
        return pl.BlockSpec(a.shape, lambda i: (0,) * nd)

    kernel = functools.partial(cnn_extractor_kernel, b_blk=b_blk, t_pad=t_pad)

    out = pl.pallas_call(
        kernel,
        grid=(n_steps,),
        in_specs=[pl.BlockSpec((rows, X_W), lambda i: (i, 0)),        # fused input rows
                  const_spec(K),                                      # per-t constants
                  const_spec(A),                                      # folded (128,1280) map
                  const_spec(P), const_spec(OB)],                     # conv_down + bias
        out_specs=pl.BlockSpec((rows, OUT_W), lambda i: (i, 0)),
        out_shape=jax.ShapeDtypeStruct((b_pad * t_pad, OUT_W), jnp.float32),
        compiler_params=pltpu.CompilerParams(
            dimension_semantics=("parallel",),
            vmem_limit_bytes=32 * 1024 * 1024),
    )(X, K, A, P, OB)

    return out.reshape(b_pad, t_pad, OUT_W)[:b, :t, :]


def init_params(key, t, channel=8):
    ks = list(jax.random.split(key, 32))
    it = iter(ks)

    def nrm(shape, scale=0.2):
        return (jax.random.normal(next(it), shape) * scale).astype(jnp.float32)

    return dict(
        conv1d_p_w=nrm((D, D, 3), 0.15),        # Conv1d(20,20,3) weight (out,in,k)
        conv1d_p_b=nrm((D,), 0.1),
        conv1d_v_w=nrm((D, D, 3), 0.15),
        conv1d_v_b=nrm((D,), 0.1),
        emb=nrm((20, 2 * t), 0.5),              # nn.Embedding(20, t*c*n) weight (deterministic)
        mlp_w=nrm((D, 8), 0.3),                 # Linear(8, 20) weight (out,in)
        mlp_b=nrm((D,), 0.1),
        pw_w=nrm((N_SUB, channel), 0.5),        # Conv2d(1,8,1) weight[:,0,0,0] per subnet
        pw_b=nrm((N_SUB, channel), 0.1),
        dw_w=nrm((TOTAL_STAGES, channel, 2, 3), 0.4),  # depthwise Conv2d(8,8,(2,3),groups=8)
        dw_b=nrm((TOTAL_STAGES, channel), 0.1),
        bn_gamma=jnp.ones((N_SUB, channel), jnp.float32),
        bn_beta=jnp.zeros((N_SUB, channel), jnp.float32),
        bn_mean=jnp.zeros((N_SUB, channel), jnp.float32),
        bn_var=jnp.ones((N_SUB, channel), jnp.float32),
        down_w=nrm((N_SUB * channel,), 0.3),    # Conv2d(32,1,1) weight[0,:,0,0]
        down_b=nrm((1,), 0.1),
    )


def reference_forward(x, params):
    """Pure-JAX reference, literal translation of the PyTorch forward (eval mode)."""
    x = x.astype(jnp.float32)
    b, t, _ = x.shape
    p, v, time = x[..., :20], x[..., 20:40], x[..., 40:]

    def conv1d_embed(xx, w, bias):
        xc = jnp.transpose(xx, (0, 2, 1))[:, :, None, :]             # (b, 20, 1, t)
        xc = jnp.pad(xc, ((0, 0), (0, 0), (0, 0), (2, 0)))           # ConstantPad1d((2,0))
        w4 = w[:, :, None, :]                                        # (out, in, 1, 3)
        y = lax.conv_general_dilated(xc, w4, (1, 1), 'VALID',
                                     dimension_numbers=('NCHW', 'OIHW', 'NCHW'))
        y = y + bias[None, :, None, None]
        return jnp.transpose(y[:, :, 0, :], (0, 2, 1))               # (b, t, 20)

    p_e = conv1d_embed(p, params['conv1d_p_w'], params['conv1d_p_b'])
    v_e = conv1d_embed(v, params['conv1d_v_w'], params['conv1d_v_b'])

    pv = jnp.stack([p_e, v_e], axis=2)[:, :, None, :, :]             # (b, t, 1, 2, 20)
    bb, tt, c, n, d = pv.shape
    pv2 = jnp.transpose(pv, (0, 4, 1, 2, 3)).reshape(bb, d, tt * c * n)
    pv2 = pv2 + params['emb'][None, :, :]                            # position_ids = arange(20)
    pv = jnp.transpose(pv2.reshape(bb, d, tt, c, n), (0, 2, 3, 4, 1))

    tsel = jnp.take(time, jnp.array(TIME_IDX), axis=-1)
    tf = tsel @ params['mlp_w'].T + params['mlp_b']                  # Dropout eval = identity
    seq = pv + tf[:, :, None, None, :]
    seq = seq.reshape(bb * tt, c, n, d)                              # (b t) c n d  == NCHW

    def subnet(xx, s):
        y = xx * params['pw_w'][s].reshape(1, N_CH, 1, 1) + params['pw_b'][s].reshape(1, N_CH, 1, 1)
        for j in range(N_STAGES[s]):
            g = STAGE_BASE[s] + j
            dil = 1 if j == 0 else 2
            yp = jnp.pad(y, ((0, 0), (0, 0), (0, 1), (dil, dil)))    # ConstantPad2d((dil,dil,0,1))
            y = lax.conv_general_dilated(
                yp, params['dw_w'][g][:, None, :, :], (1, 1), 'VALID',
                rhs_dilation=(1, dil), feature_group_count=N_CH,
                dimension_numbers=('NCHW', 'OIHW', 'NCHW'))
            y = y + params['dw_b'][g].reshape(1, N_CH, 1, 1)
        m = params['bn_mean'][s].reshape(1, N_CH, 1, 1)
        vr = params['bn_var'][s].reshape(1, N_CH, 1, 1)
        ga = params['bn_gamma'][s].reshape(1, N_CH, 1, 1)
        be = params['bn_beta'][s].reshape(1, N_CH, 1, 1)
        y = (y - m) / jnp.sqrt(vr + BN_EPS) * ga + be
        return y * jnp.tanh(jax.nn.softplus(y))                      # Mish

    cat = jnp.concatenate([subnet(seq, s) for s in range(N_SUB)], axis=1)   # (N, 32, 2, 20)
    down = jnp.einsum('nchw,c->nhw', cat, params['down_w']) + params['down_b'][0]
    return down.reshape(bb, tt, n * d)                               # b t (c n d)


if __name__ == "__main__":
    key = jax.random.PRNGKey(0)
    kx, kp, kx2 = jax.random.split(key, 3)
    b, t = 2, 8
    x = jax.random.normal(kx, (b, t, 52), dtype=jnp.float32)
    params = init_params(kp, t)

    fwd = jax.jit(cnn_extractor_forward)
    out = jax.block_until_ready(fwd(x, params))
    assert out.shape == (b, t, 40), out.shape

    ref = reference_forward(x, params)
    err = jnp.max(jnp.abs(out - ref))
    if not jnp.allclose(out, ref, atol=1e-3, rtol=1e-3):
        raise AssertionError(f"kernel/reference mismatch, max abs err = {err}")

    # Second (still small) check: exercises b_blk > 1, i.e. the multi-item
    # in-kernel K broadcast-add path and a 2-step "parallel" grid.
    b2 = 8
    x2 = jax.random.normal(kx2, (b2, t, 52), dtype=jnp.float32)
    out2 = jax.block_until_ready(fwd(x2, params))
    ref2 = reference_forward(x2, params)
    err2 = jnp.max(jnp.abs(out2 - ref2))
    if not jnp.allclose(out2, ref2, atol=1e-3, rtol=1e-3):
        raise AssertionError(f"kernel/reference mismatch (b=8), max abs err = {err2}")

    print("KERNEL_OK")
</pallas_src>

<mosaic_0001>
module attributes {stable_mosaic.version = 11 : i64} {
  func.func @cnn_extractor_kernel(%arg0: i32, %arg1: memref<8x128xf32, #tpu.memory_space<vmem>>, %arg2: memref<8x1280xf32, #tpu.memory_space<vmem>>, %arg3: memref<128x1280xf32, #tpu.memory_space<vmem>>, %arg4: memref<1280x40xf32, #tpu.memory_space<vmem>>, %arg5: memref<1x40xf32, #tpu.memory_space<vmem>>, %arg6: memref<8x40xf32, #tpu.memory_space<vmem>>) attributes {dimension_semantics = [#tpu.dimension_semantics<parallel>], iteration_bounds = array<i64: 2>, scalar_prefetch = 0 : i64, scratch_operands = 0 : i64, tpu.core_type = #tpu.core_type<tc>, window_params = [{transform_indices = @transform_0, window_bounds = array<i64: 8, 128>}, {pipeline_mode = #tpu.pipeline_mode<synchronous>, transform_indices = @transform_1, window_bounds = array<i64: 8, 1280>}, {pipeline_mode = #tpu.pipeline_mode<synchronous>, transform_indices = @transform_2, window_bounds = array<i64: 128, 1280>}, {pipeline_mode = #tpu.pipeline_mode<synchronous>, transform_indices = @transform_3, window_bounds = array<i64: 1280, 40>}, {pipeline_mode = #tpu.pipeline_mode<synchronous>, transform_indices = @transform_4, window_bounds = array<i64: 1, 40>}, {transform_indices = @transform_5, window_bounds = array<i64: 8, 40>}]} {
    %c0 = arith.constant 0 : index
    %c0_0 = arith.constant 0 : index
    %0 = vector.load %arg1[%c0, %c0_0] : memref<8x128xf32, #tpu.memory_space<vmem>>, vector<8x128xf32>
    %c0_1 = arith.constant 0 : index
    %c0_2 = arith.constant 0 : index
    %1 = vector.load %arg3[%c0_1, %c0_2] : memref<128x1280xf32, #tpu.memory_space<vmem>>, vector<128x1280xf32>
    %cst = arith.constant dense<0.000000e+00> : vector<8x1280xf32>
    %2 = tpu.matmul %0, %1, %cst {dimension_numbers = #tpu.dot_dimension_numbers<[1], [0], [0], [1], [0, 0, 1, 1], [], []>} : vector<8x128xf32>, vector<128x1280xf32>, vector<8x1280xf32> -> vector<8x1280xf32>
    %c0_3 = arith.constant 0 : index
    %c0_4 = arith.constant 0 : index
    %3 = vector.load %arg2[%c0_3, %c0_4] : memref<8x1280xf32, #tpu.memory_space<vmem>>, vector<8x1280xf32>
    %4 = arith.addf %2, %3 : vector<8x1280xf32>
    %5 = math.absf %4 : vector<8x1280xf32>
    %cst_5 = arith.constant 0.000000e+00 : f32
    %6 = vector.broadcast %cst_5 : f32 to vector<8x1280xf32>
    %7 = arith.subf %6, %5 : vector<8x1280xf32>
    %8 = math.exp %7 : vector<8x1280xf32>
    %cst_6 = arith.constant 0.000000e+00 : f32
    %9 = vector.broadcast %cst_6 : f32 to vector<8x1280xf32>
    %10 = arith.cmpf ogt, %4, %9 : vector<8x1280xf32>
    %cst_7 = arith.constant 2.000000e+00 : f32
    %11 = vector.broadcast %cst_7 : f32 to vector<8x1280xf32>
    %12 = arith.mulf %11, %8 : vector<8x1280xf32>
    %cst_8 = arith.constant 1.000000e+00 : f32
    %13 = vector.broadcast %cst_8 : f32 to vector<8x1280xf32>
    %14 = arith.addf %13, %12 : vector<8x1280xf32>
    %cst_9 = arith.constant 2.000000e+00 : f32
    %15 = vector.broadcast %cst_9 : f32 to vector<8x1280xf32>
    %16 = arith.addf %8, %15 : vector<8x1280xf32>
    %17 = arith.mulf %8, %16 : vector<8x1280xf32>
    %18 = arith.select %10, %14, %17 : vector<8x1280xi1>, vector<8x1280xf32>
    %cst_10 = arith.constant 2.000000e+00 : f32
    %19 = vector.broadcast %cst_10 : f32 to vector<8x1280xf32>
    %20 = arith.mulf %19, %8 : vector<8x1280xf32>
    %21 = arith.mulf %20, %8 : vector<8x1280xf32>
    %cst_11 = arith.constant 2.000000e+00 : f32
    %22 = vector.broadcast %cst_11 : f32 to vector<8x1280xf32>
    %23 = arith.select %10, %21, %22 : vector<8x1280xi1>, vector<8x1280xf32>
    %24 = arith.addf %18, %23 : vector<8x1280xf32>
    %25 = tpu.reciprocal %24 {approx = true} : vector<8x1280xf32> -> vector<8x1280xf32>
    %26 = arith.mulf %24, %25 : vector<8x1280xf32>
    %cst_12 = arith.constant 2.000000e+00 : f32
    %27 = vector.broadcast %cst_12 : f32 to vector<8x1280xf32>
    %28 = arith.subf %27, %26 : vector<8x1280xf32>
    %29 = arith.mulf %25, %28 : vector<8x1280xf32>
    %30 = arith.mulf %4, %18 : vector<8x1280xf32>
    %31 = arith.mulf %30, %29 : vector<8x1280xf32>
    %c0_13 = arith.constant 0 : index
    %c0_14 = arith.constant 0 : index
    %32 = vector.load %arg4[%c0_13, %c0_14] : memref<1280x40xf32, #tpu.memory_space<vmem>>, vector<1280x40xf32>
    %cst_15 = arith.constant dense<0.000000e+00> : vector<8x40xf32>
    %33 = tpu.matmul %31, %32, %cst_15 {dimension_numbers = #tpu.dot_dimension_numbers<[1], [0], [0], [1], [0, 0, 1, 1], [], []>} : vector<8x1280xf32>, vector<1280x40xf32>, vector<8x40xf32> -> vector<8x40xf32>
    %c0_16 = arith.constant 0 : index
    %c0_17 = arith.constant 0 : index
    %34 = vector.load %arg5[%c0_16, %c0_17] : memref<1x40xf32, #tpu.memory_space<vmem>>, vector<1x40xf32>
    %35 = vector.broadcast %34 : vector<1x40xf32> to vector<8x40xf32>
    %36 = arith.addf %33, %35 : vector<8x40xf32>
    %c0_18 = arith.constant 0 : index
    %c0_19 = arith.constant 0 : index
    %37 = vector.load %arg6[%c0_18, %c0_19] : memref<8x40xf32, #tpu.memory_space<vmem>>, vector<8x40xf32>
    tpu.vector_store %arg6[%c0_18, %c0_19], %36 {strides = array<i32>} : memref<8x40xf32, #tpu.memory_space<vmem>>, vector<8x40xf32>,
    return
  }
  func.func @transform_0(%arg0: i32) -> (i32, i32) {
    %c0_i32 = arith.constant 0 : i32
    %c0_i32_0 = arith.constant 0 : i32
    return %arg0, %c0_i32 : i32, i32
  }
  func.func @transform_1(%arg0: i32) -> (i32, i32) {
    %c0_i32 = arith.constant 0 : i32
    %c0_i32_0 = arith.constant 0 : i32
    %c0_i32_1 = arith.constant 0 : i32
    return %c0_i32, %c0_i32_0 : i32, i32
  }
  func.func @transform_2(%arg0: i32) -> (i32, i32) {
    %c0_i32 = arith.constant 0 : i32
    %c0_i32_0 = arith.constant 0 : i32
    %c0_i32_1 = arith.constant 0 : i32
    return %c0_i32, %c0_i32_0 : i32, i32
  }
  func.func @transform_3(%arg0: i32) -> (i32, i32) {
    %c0_i32 = arith.constant 0 : i32
    %c0_i32_0 = arith.constant 0 : i32
    %c0_i32_1 = arith.constant 0 : i32
    return %c0_i32, %c0_i32_0 : i32, i32
  }
  func.func @transform_4(%arg0: i32) -> (i32, i32) {
    %c0_i32 = arith.constant 0 : i32
    %c0_i32_0 = arith.constant 0 : i32
    %c0_i32_1 = arith.constant 0 : i32
    return %c0_i32, %c0_i32_0 : i32, i32
  }
  func.func @transform_5(%arg0: i32) -> (i32, i32) {
    %c0_i32 = arith.constant 0 : i32
    %c0_i32_0 = arith.constant 0 : i32
    return %arg0, %c0_i32 : i32, i32
  }
}

</mosaic_0001>

<llo_original>
// kernel: mul.391
$region0: #{mul.391}
  %s0 = inlined_call_operand.vmem [shape: f32[4,8], index: 0, kind: input, shape index: {}]
  %s1 = inlined_call_operand.vmem [shape: f32[32], index: 1, kind: output, shape index: {}]
  $region1: #{mul.391} parent=0
    #allocation0 [shape = 'u8[4096]{0}', space=vmem, size = 0x1000, scoped, tag = 'scoped mem for output reshape']
    #allocation1 [shape = 'u8[4096]{0}', space=vmem, size = 0x1000, scoped, tag = 'scoped mem for input reshape']
    %s3 = sshllo.u32 0, 4
    %v4 = vld [vmem:[%s0] sm:%s3]
    %5 = vst [vmem:[#allocation1] sm:%s3] %v4
    %v6 = vld [vmem:[#allocation1] sm:$0x1]
    %vm7 = vcmask 64512
    %8 = vst.msk [vmem:[#allocation0] sm:$0x1] %vm7, %v6
    %s9 = scalar_lea.vmem [#allocation1], 3
    %v10 = vld [vmem:[%s9] sm:$0x1]
    %11 = vrot.lane.b32.xlu0 %v10, 24
    %v12 = vpop.permute.xlu0 %11
    %vm13 = vcmask 261312
    %14 = vst.msk [vmem:[#allocation0] sm:$0x1] %vm13, %v12
    %s15 = scalar_lea.vmem [#allocation1], 2
    %v16 = vld [vmem:[%s15] sm:$0x1]
    %17 = vrot.lane.b32.xlu0 %v16, 16
    %v18 = vpop.permute.xlu0 %17
    %vm19 = vcmask 195712
    %20 = vst.msk [vmem:[#allocation0] sm:$0x1] %vm19, %v18
    %s21 = scalar_lea.vmem [#allocation1], 1
    %v22 = vld [vmem:[%s21] sm:$0x1]
    %23 = vrot.lane.b32.xlu0 %v22, 8
    %v24 = vpop.permute.xlu0 %23
    %vm25 = vcmask 130112
    %26 = vst.msk [vmem:[#allocation0] sm:$0x1] %vm25, %v24
    %s28 = sshllo.u32 0, 1
    %v30 = vld [vmem:[#allocation0] sm:%s28]
    %s31 = sshllo.u32 0, 1
    %32 = vst [vmem:[%s1] sm:%s31] %v30

// kernel: mul.444
$region0: #{mul.444}
  %s0 = inlined_call_operand.vmem [shape: f32[4,8,2,3], index: 0, kind: input, shape index: {}]
  %s1 = inlined_call_operand.vmem [shape: f32[32,6], index: 1, kind: output, shape index: {}]
  $region1: #{mul.444} parent=0
    #allocation0 [shape = 'u8[24576]{0}', space=vmem, size = 0x6000, scoped, tag = 'scoped mem for input reshape']
    %s3 = sshllo.u32 0, 4
    %s4 = smul.addr 4, 5
    %s5 = scalar_lea.vmem %s0, %s4
    %v6 = vld [vmem:[%s5] sm:%s3]
    %s7 = scalar_lea.vmem [#allocation0], 40
    %8 = vst [vmem:[%s7] sm:%s3] %v6
    %s9 = smul.addr 4, 4
    %s10 = scalar_lea.vmem %s0, %s9
    %v11 = vld [vmem:[%s10] sm:%s3]
    %s12 = scalar_lea.vmem [#allocation0], 32
    %13 = vst [vmem:[%s12] sm:%s3] %v11
    %s14 = smul.addr 4, 3
    %s15 = scalar_lea.vmem %s0, %s14
    %v16 = vld [vmem:[%s15] sm:%s3]
    %s17 = scalar_lea.vmem [#allocation0], 24
    %18 = vst [vmem:[%s17] sm:%s3] %v16
    %s19 = smul.addr 4, 2
    %s20 = scalar_lea.vmem %s0, %s19
    %v21 = vld [vmem:[%s20] sm:%s3]
    %s22 = scalar_lea.vmem [#allocation0], 16
    %23 = vst [vmem:[%s22] sm:%s3] %v21
    %s24 = scalar_lea.vmem %s0, 4
    %v25 = vld [vmem:[%s24] sm:%s3]
    %s26 = scalar_lea.vmem [#allocation0], 8
    %27 = vst [vmem:[%s26] sm:%s3] %v25
    %v28 = vld [vmem:[%s0] sm:%s3]
    %29 = vst [vmem:[#allocation0] sm:%s3] %v28
    %v30 = vld [vmem:[#allocation0] ss:$8 sm:$0xf]
    %s31 = smov 48
    %v32 = vld [vmem:[#allocation0] ss:$8 sm:%s31]
    %vm33 = vcmask 1045508
    %v34 = vsel %vm33, %v32, %v30
    %vm35 = vcmask 64512
    %36 = vst.msk [vmem:[%s1] sm:$0x3f] %vm35, %v34
    %s37 = scalar_lea.vmem [#allocation0], 3
    %v38 = vld [vmem:[%s37] ss:$8 sm:$0xf]
    %s39 = scalar_lea.vmem [#allocation0], 3
    %s40 = smov 48
    %v41 = vld [vmem:[%s39] ss:$8 sm:%s40]
    %vm42 = vcmask 1045508
    %v43 = vsel %vm42, %v41, %v38
    %44 = vrot.lane.b32.xlu0 %v43, 24
    %v45 = vpop.permute.xlu0 %44
    %vm46 = vcmask 261312
    %47 = vst.msk [vmem:[%s1] sm:$0x3f] %vm46, %v45
    %s48 = scalar_lea.vmem [#allocation0], 2
    %v49 = vld [vmem:[%s48] ss:$8 sm:$0xf]
    %s50 = scalar_lea.vmem [#allocation0], 2
    %s51 = smov 48
    %v52 = vld [vmem:[%s50] ss:$8 sm:%s51]
    %vm53 = vcmask 1045508
    %v54 = vsel %vm53, %v52, %v49
    %55 = vrot.lane.b32.xlu0 %v54, 16
    %v56 = vpop.permute.xlu0 %55
    %vm57 = vcmask 195712
    %58 = vst.msk [vmem:[%s1] sm:$0x3f] %vm57, %v56
    %s59 = scalar_lea.vmem [#allocation0], 1
    %v60 = vld [vmem:[%s59] ss:$8 sm:$0xf]
    %s61 = scalar_lea.vmem [#allocation0], 1
    %s62 = smov 48
    %v63 = vld [vmem:[%s61] ss:$8 sm:%s62]
    %vm64 = vcmask 1045508
    %v65 = vsel %vm64, %v63, %v60
    %66 = vrot.lane.b32.xlu0 %v65, 8
    %v67 = vpop.permute.xlu0 %66
    %vm68 = vcmask 130112
    %69 = vst.msk [vmem:[%s1] sm:$0x3f] %vm68, %v67

// kernel: mul.602
$region0: #{mul.602}
  %s0 = inlined_call_operand.vmem [shape: f32[1,32,24], index: 0, kind: input, shape index: {}]
  %s1 = inlined_call_operand.vmem [shape: f32[768], index: 1, kind: output, shape index: {}]
  %s2 = smov 3
  %v3 = vld [vmem:[%s0] ss:$16 sm:%s2]
  %vm4 = vcmask 195584
  %5 = vst.msk [vmem:[%s1] ss:$3 sm:$0x3] %vm4, %v3
  %s6 = scalar_lea.vmem %s0, 5
  %s7 = smov 3
  %v8 = vld [vmem:[%s6] ss:$16 sm:%s7]
  %s9 = scalar_lea.vmem %s0, 5
  %s10 = smov 3
  %v11 = vld [vmem:[%s9] ss:$16 sm:%s10]
  %vm12 = vcmask 64512
  %v13 = vsel %vm12, %v11, %v8
  %14 = vrot.lane.b32.xlu0 %v13, 120
  %v15 = vpop.permute.xlu0 %14
  %vm16 = vcmask 130048
  %s17 = scalar_lea.vmem %s1, 1
  %18 = vst.msk [vmem:[%s17] ss:$3 sm:$0x3] %vm16, %v15
  %vm19 = vcmask 1048512
  %20 = vst.msk [vmem:[%s1] ss:$3 sm:$0x3] %vm19, %v15
  %s21 = scalar_lea.vmem %s0, 10
  %s22 = smov 3
  %v23 = vld [vmem:[%s21] ss:$16 sm:%s22]
  %s24 = scalar_lea.vmem %s0, 10
  %s25 = smov 3
  %v26 = vld [vmem:[%s24] ss:$16 sm:%s25]
  %vm27 = vcmask 130048
  %v28 = vsel %vm27, %v26, %v23
  %29 = vrot.lane.b32.xlu0 %v28, 112
  %v30 = vpop.permute.xlu0 %29
  %vm31 = vcmask 64512
  %s32 = scalar_lea.vmem %s1, 2
  %33 = vst.msk [vmem:[%s32] ss:$3 sm:$0x3] %vm31, %v30
  %vm34 = vcmask 1048448
  %s35 = scalar_lea.vmem %s1, 1
  %36 = vst.msk [vmem:[%s35] ss:$3 sm:$0x3] %vm34, %v30
  %s37 = scalar_lea.vmem %s0, 15
  %s38 = smov 3
  %v39 = vld [vmem:[%s37] ss:$16 sm:%s38]
  %40 = vrot.lane.b32.xlu0 %v39, 104
  %v41 = vpop.permute.xlu0 %40
  %vm42 = vcmask 1048384
  %s43 = scalar_lea.vmem %s1, 2
  %44 = vst.msk [vmem:[%s43] ss:$3 sm:$0x3] %vm42, %v41
  %s45 = scalar_lea.vmem %s0, 4
  %s46 = smov 3
  %v47 = vld [vmem:[%s45] ss:$16 sm:%s46]
  %48 = vrot.lane.b32.xlu0 %v47, 96
  %v49 = vpop.permute.xlu0 %48
  %vm50 = vcmask 982784
  %51 = vst.msk [vmem:[%s1] ss:$3 sm:$0x3] %vm50, %v49
  %s52 = scalar_lea.vmem %s0, 9
  %s53 = smov 3
  %v54 = vld [vmem:[%s52] ss:$16 sm:%s53]
  %55 = vrot.lane.b32.xlu0 %v54, 88
  %v56 = vpop.permute.xlu0 %55
  %vm57 = vcmask 917184
  %s58 = scalar_lea.vmem %s1, 1
  %59 = vst.msk [vmem:[%s58] ss:$3 sm:$0x3] %vm57, %v56
  %s60 = scalar_lea.vmem %s0, 14
  %s61 = smov 3
  %v62 = vld [vmem:[%s60] ss:$16 sm:%s61]
  %63 = vrot.lane.b32.xlu0 %v62, 80
  %v64 = vpop.permute.xlu0 %63
  %vm65 = vcmask 851584
  %s66 = scalar_lea.vmem %s1, 2
  %67 = vst.msk [vmem:[%s66] ss:$3 sm:$0x3] %vm65, %v64
  %s68 = scalar_lea.vmem %s0, 3
  %s69 = smov 3
  %v70 = vld [vmem:[%s68] ss:$16 sm:%s69]
  %71 = vrot.lane.b32.xlu0 %v70, 72
  %v72 = vpop.permute.xlu0 %71
  %vm73 = vcmask 785984
  %74 = vst.msk [vmem:[%s1] ss:$3 sm:$0x3] %vm73, %v72
  %s75 = scalar_lea.vmem %s0, 8
  %s76 = smov 3
  %v77 = vld [vmem:[%s75] ss:$16 sm:%s76]
  %78 = vrot.lane.b32.xlu0 %v77, 64
  %v79 = vpop.permute.xlu0 %78
  %vm80 = vcmask 720384
  %s81 = scalar_lea.vmem %s1, 1
  %82 = vst.msk [vmem:[%s81] ss:$3 sm:$0x3] %vm80, %v79
  %s83 = scalar_lea.vmem %s0, 13
  %s84 = smov 3
  %v85 = vld [vmem:[%s83] ss:$16 sm:%s84]
  %86 = vrot.lane.b32.xlu0 %v85, 56
  %v87 = vpop.permute.xlu0 %86
  %vm88 = vcmask 654784
  %s89 = scalar_lea.vmem %s1, 2
  %90 = vst.msk [vmem:[%s89] ss:$3 sm:$0x3] %vm88, %v87
  %s91 = scalar_lea.vmem %s0, 2
  %s92 = smov 3
  %v93 = vld [vmem:[%s91] ss:$16 sm:%s92]
  %94 = vrot.lane.b32.xlu0 %v93, 48
  %v95 = vpop.permute.xlu0 %94
  %vm96 = vcmask 589184
  %97 = vst.msk [vmem:[%s1] ss:$3 sm:$0x3] %vm96, %v95
  %s98 = scalar_lea.vmem %s0, 7
  %s99 = smov 3
  %v100 = vld [vmem:[%s98] ss:$16 sm:%s99]
  %101 = vrot.lane.b32.xlu0 %v100, 40
  %v102 = vpop.permute.xlu0 %101
  %vm103 = vcmask 523584
  %s104 = scalar_lea.vmem %s1, 1
  %105 = vst.msk [vmem:[%s104] ss:$3 sm:$0x3] %vm103, %v102
  %s106 = scalar_lea.vmem %s0, 12
  %s107 = smov 3
  %v108 = vld [vmem:[%s106] ss:$16 sm:%s107]
  %109 = vrot.lane.b32.xlu0 %v108, 32
  %v110 = vpop.permute.xlu0 %109
  %vm111 = vcmask 457984
  %s112 = scalar_lea.vmem %s1, 2
  %113 = vst.msk [vmem:[%s112] ss:$3 sm:$0x3] %vm111, %v110
  %s114 = scalar_lea.vmem %s0, 1
  %s115 = smov 3
  %v116 = vld [vmem:[%s114] ss:$16 sm:%s115]
  %117 = vrot.lane.b32.xlu0 %v116, 24
  %v118 = vpop.permute.xlu0 %117
  %vm119 = vcmask 392384
  %120 = vst.msk [vmem:[%s1] ss:$3 sm:$0x3] %vm119, %v118
  %s121 = scalar_lea.vmem %s0, 6
  %s122 = smov 3
  %v123 = vld [vmem:[%s121] ss:$16 sm:%s122]
  %124 = vrot.lane.b32.xlu0 %v123, 16
  %v125 = vpop.permute.xlu0 %124
  %vm126 = vcmask 326784
  %s127 = scalar_lea.vmem %s1, 1
  %128 = vst.msk [vmem:[%s127] ss:$3 sm:$0x3] %vm126, %v125
  %s129 = scalar_lea.vmem %s0, 11
  %s130 = smov 3
  %v131 = vld [vmem:[%s129] ss:$16 sm:%s130]
  %132 = vrot.lane.b32.xlu0 %v131, 8
  %v133 = vpop.permute.xlu0 %132
  %vm134 = vcmask 261184
  %s135 = scalar_lea.vmem %s1, 2
  %136 = vst.msk [vmem:[%s135] ss:$3 sm:$0x3] %vm134, %v133

// kernel: mul.773
$region0: #{mul.773}
  #allocation0 [shape = 's32[1]{0}', space=sflag, size = 0x4, scoped, tag = 'scoped memory for mul.773']
  %s0 = inlined_call_operand.<no memory space> [shape: f32[], index: 0, kind: input, shape index: {}]
  %s1 = inlined_call_operand.vmem [shape: f32[1,40], index: 1, kind: output, shape index: {}]
  %v2 = vstv %s0
  %3 = vst [vmem:[%s1] sm:$0x1] %v2

// kernel: cnn_extractor_forward.1
$region0: #{cnn_extractor_forward.1}
  #allocation0 [shape = 'u32[]', space=smem, size = 0x4, offset = 0x4, fixed_abs, tag = 'smem constant byte address 0x4 - core index']
  #allocation1 [shape = 'u32[144,128]{1,0:T(1,128)}', space=vmem, size = 0x12000, scoped, tag = 'internal scratch']
  %s0 = inlined_call_operand.vmem [shape: f32[16,128], index: 0, kind: input, shape index: {}]
  %s1 = inlined_call_operand.vmem [shape: f32[8,1280], index: 1, kind: input, shape index: {}]
  %s2 = inlined_call_operand.vmem [shape: f32[128,1280], index: 2, kind: input, shape index: {}]
  %s3 = inlined_call_operand.vmem [shape: f32[1280,40], index: 3, kind: input, shape index: {}]
  %s4 = inlined_call_operand.vmem [shape: f32[1,40], index: 4, kind: input, shape index: {}]
  %s5 = inlined_call_operand.hbm [shape: f32[16,40], index: 5, kind: output, shape index: {}]
  %s6 = sld [smem:[#allocation0]]
  $region53: #{cnn_extractor_forward.1} parent=0
    _
  %s8 = ssub.s32 1, %s6
  %s9 = scalar_select 0, %s8, %s6
  $region1: #{cnn_extractor_forward.1} parent=0
    #allocation2 [shape = 'u8[8192]{0}', space=vmem, size = 0x2000, scoped, tag = 'output window, operand 0']
    #allocation3 [shape = 's32[2]{0}', space=sflag, size = 0x8, scoped, tag = 'scoped memory for cnn_extractor_forward.1']
    %10 = vsyncpa [#allocation3], 0
    %s11 = scalar_lea.sflag [#allocation3], 1
    %12 = vsyncpa %s11, 0
    loop: start=0, step=1, limit=4
    $region2: #{cnn_extractor_forward.1} parent=1 // loop_pre_header
      _
    $region3: #{cnn_extractor_forward.1} parent=1 // loop_header
      %s14 = sphi 0, %s18
      %p15 = scmp.ge.s32.totalorder %s14, 4
      %s24 = sphi 0, %s26
      %s27 = sphi 0, %s24
      %s28 = sphi 0, %s27
      %s44 = sphi 0, %s28
      %s48 = sphi 0, %s48
      %s50 = sphi 0, %s48
      %s51 = sphi 0, %s50
      %s65 = sphi 0, %s51
      %s69 = sphi 0, %s69
      %s71 = sphi 0, %s69
      %s72 = sphi 0, %s71
      %s86 = sphi 0, %s72
      %s90 = sphi 0, %s90
      %s92 = sphi 0, %s90
      %s93 = sphi 0, %s92
      %s107 = sphi 0, %s93
      %s111 = sphi 0, %s111
      %s113 = sphi 0, %s111
      %s114 = sphi 0, %s113
      %s128 = sphi 0, %s114
      %s134 = sphi 0, %s136
      %s137 = sphi 0, %s134
      %s138 = sphi 0, %s137
      %s154 = sphi 0, %s138
    $region4: #{cnn_extractor_forward.1} parent=1 // loop_header_branch
      %17 = sbr.rel (%p15) target = $region8
    $region5: #{cnn_extractor_forward.1} parent=1 // loop_body
      %s19 = ssub.s32 %s14, 1
      %s20 = ssub.s32 %s14, 2
      %s21 = sadd.s32 %s14, 1
      %s22 = ssub.s32 %s14, %s21
      %p23 = scmp.eq.s32.totalorder %s22, 0
      %s25 = sadd.s32 %s24, 1
      %s26 = scalar_select %p23, %s24, %s25
      %p29 = pneg %p23
      %p30 = scmp.eq.s32.totalorder %s14, 1
      %p31 = por %p29, %p30
      %p32 = scmp.ne.s32.totalorder %s24, %s27
      %p33 = scmp.eq.s32.totalorder %s14, 0
      %p34 = por %p32, %p33
      %p35 = scmp.ne.s32.totalorder %s24, %s27
      %p36 = scmp.eq.s32.totalorder %s19, 1
      %p37 = por %p35, %p36
      %p38 = scmp.ne.s32.totalorder %s27, %s28
      %p39 = scmp.eq.s32.totalorder %s19, 0
      %p40 = por %p38, %p39
      %p41 = scmp.ne.s32.totalorder %s27, %s28
      %p42 = scmp.eq.s32.totalorder %s20, 1
      %p43 = por %p41, %p42
      %p45 = scmp.ne.s32.totalorder %s28, %s44
      %p46 = scmp.eq.s32.totalorder %s20, 0
      %p47 = por %p45, %p46
      %s49 = sadd.s32 %s48, 1
      %p52 = scmp.eq.s32.totalorder %s14, 1
      %p53 = scmp.ne.s32.totalorder %s48, %s50
      %p54 = scmp.eq.s32.totalorder %s14, 0
      %p55 = por %p53, %p54
      %p56 = scmp.ne.s32.totalorder %s48, %s50
      %p57 = scmp.eq.s32.totalorder %s19, 1
      %p58 = por %p56, %p57
      %p59 = scmp.ne.s32.totalorder %s50, %s51
      %p60 = scmp.eq.s32.totalorder %s19, 0
      %p61 = por %p59, %p60
      %p62 = scmp.ne.s32.totalorder %s50, %s51
      %p63 = scmp.eq.s32.totalorder %s20, 1
      %p64 = por %p62, %p63
      %p66 = scmp.ne.s32.totalorder %s51, %s65
      %p67 = scmp.eq.s32.totalorder %s20, 0
      %p68 = por %p66, %p67
      %s70 = sadd.s32 %s69, 1
      %p73 = scmp.eq.s32.totalorder %s14, 1
      %p74 = scmp.ne.s32.totalorder %s69, %s71
      %p75 = scmp.eq.s32.totalorder %s14, 0
      %p76 = por %p74, %p75
      %p77 = scmp.ne.s32.totalorder %s69, %s71
      %p78 = scmp.eq.s32.totalorder %s19, 1
      %p79 = por %p77, %p78
      %p80 = scmp.ne.s32.totalorder %s71, %s72
      %p81 = scmp.eq.s32.totalorder %s19, 0
      %p82 = por %p80, %p81
      %p83 = scmp.ne.s32.totalorder %s71, %s72
      %p84 = scmp.eq.s32.totalorder %s20, 1
      %p85 = por %p83, %p84
      %p87 = scmp.ne.s32.totalorder %s72, %s86
      %p88 = scmp.eq.s32.totalorder %s20, 0
      %p89 = por %p87, %p88
      %s91 = sadd.s32 %s90, 1
      %p94 = scmp.eq.s32.totalorder %s14, 1
      %p95 = scmp.ne.s32.totalorder %s90, %s92
      %p96 = scmp.eq.s32.totalorder %s14, 0
      %p97 = por %p95, %p96
      %p98 = scmp.ne.s32.totalorder %s90, %s92
      %p99 = scmp.eq.s32.totalorder %s19, 1
      %p100 = por %p98, %p99
      %p101 = scmp.ne.s32.totalorder %s92, %s93
      %p102 = scmp.eq.s32.totalorder %s19, 0
      %p103 = por %p101, %p102
      %p104 = scmp.ne.s32.totalorder %s92, %s93
      %p105 = scmp.eq.s32.totalorder %s20, 1
      %p106 = por %p104, %p105
      %p108 = scmp.ne.s32.totalorder %s93, %s107
      %p109 = scmp.eq.s32.totalorder %s20, 0
      %p110 = por %p108, %p109
      %s112 = sadd.s32 %s111, 1
      %p115 = scmp.eq.s32.totalorder %s14, 1
      %p116 = scmp.ne.s32.totalorder %s111, %s113
      %p117 = scmp.eq.s32.totalorder %s14, 0
      %p118 = por %p116, %p117
      %p119 = scmp.ne.s32.totalorder %s111, %s113
      %p120 = scmp.eq.s32.totalorder %s19, 1
      %p121 = por %p119, %p120
      %p122 = scmp.ne.s32.totalorder %s113, %s114
      %p123 = scmp.eq.s32.totalorder %s19, 0
      %p124 = por %p122, %p123
      %p125 = scmp.ne.s32.totalorder %s113, %s114
      %p126 = scmp.eq.s32.totalorder %s20, 1
      %p127 = por %p125, %p126
      %p129 = scmp.ne.s32.totalorder %s114, %s128
      %p130 = scmp.eq.s32.totalorder %s20, 0
      %p131 = por %p129, %p130
      %s132 = ssub.s32 %s14, %s21
      %p133 = scmp.eq.s32.totalorder %s132, 0
      %s135 = sadd.s32 %s134, 1
      %s136 = scalar_select %p133, %s134, %s135
      %p139 = pneg %p133
      %p140 = scmp.eq.s32.totalorder %s14, 1
      %p141 = por %p139, %p140
      %p142 = scmp.ne.s32.totalorder %s134, %s137
      %p143 = scmp.eq.s32.totalorder %s14, 0
      %p144 = por %p142, %p143
      %p145 = scmp.ne.s32.totalorder %s134, %s137
      %p146 = scmp.eq.s32.totalorder %s19, 1
      %p147 = por %p145, %p146
      %p148 = scmp.ne.s32.totalorder %s137, %s138
      %p149 = scmp.eq.s32.totalorder %s19, 0
      %p150 = por %p148, %p149
      %p151 = scmp.ne.s32.totalorder %s137, %s138
      %p152 = scmp.eq.s32.totalorder %s20, 1
      %p153 = por %p151, %p152
      %p155 = scmp.ne.s32.totalorder %s138, %s154
      %p156 = scmp.eq.s32.totalorder %s20, 0
      %p157 = por %p155, %p156
      %p158 = scmp.le.s32.totalorder 1, %s14
      %p159 = scmp.lt.s32.totalorder %s14, 3
      %p160 = pnand %p158, %p159
      %p161 = pneg %p160
      // Predicated region
      $region9: #{cnn_extractor_forward.1} parent=5 // pred_check
        _
      $region10: #{cnn_extractor_forward.1} parent=5 // pred_check_branch
        %163 = sbr.rel (%p160) target = $region12
      $region11: #{cnn_extractor_forward.1} parent=5 // pred_region
        %s164 = ssub.s32 %s14, 1
        // Predicated region
        $region13: #{cnn_extractor_forward.1} parent=11 // pred_check
          %p165 = pneg %p61
        $region14: #{cnn_extractor_forward.1} parent=11 // pred_check_branch
          %167 = sbr.rel (%p165) target = $region16
        $region15: #{cnn_extractor_forward.1} parent=11 // pred_region
          _
        $region16: #{cnn_extractor_forward.1} parent=11 // pred_fallthru
          _
        // Predicated region
        $region17: #{cnn_extractor_forward.1} parent=11 // pred_check
          %p168 = pneg %p82
        $region18: #{cnn_extractor_forward.1} parent=11 // pred_check_branch
          %170 = sbr.rel (%p168) target = $region20
        $region19: #{cnn_extractor_forward.1} parent=11 // pred_region
          _
        $region20: #{cnn_extractor_forward.1} parent=11 // pred_fallthru
          _
        // Predicated region
        $region21: #{cnn_extractor_forward.1} parent=11 // pred_check
          %p171 = pneg %p103
        $region22: #{cnn_extractor_forward.1} parent=11 // pred_check_branch
          %173 = sbr.rel (%p171) target = $region24
        $region23: #{cnn_extractor_forward.1} parent=11 // pred_region
          _
        $region24: #{cnn_extractor_forward.1} parent=11 // pred_fallthru
          _
        // Predicated region
        $region25: #{cnn_extractor_forward.1} parent=11 // pred_check
          %p174 = pneg %p124
        $region26: #{cnn_extractor_forward.1} parent=11 // pred_check_branch
          %176 = sbr.rel (%p174) target = $region28
        $region27: #{cnn_extractor_forward.1} parent=11 // pred_region
          _
        $region28: #{cnn_extractor_forward.1} parent=11 // pred_fallthru
          _
      $region12: #{cnn_extractor_forward.1} parent=5 // pred_fallthru
        _
      %p177 = scmp.lt.s32.totalorder %s14, 2
      // Predicated region
      $region29: #{cnn_extractor_forward.1} parent=5 // pred_check
        %p178 = pneg %p177
      $region30: #{cnn_extractor_forward.1} parent=5 // pred_check_branch
        %180 = sbr.rel (%p178) target = $region32
      $region31: #{cnn_extractor_forward.1} parent=5 // pred_region
        // Predicated region
        $region33: #{cnn_extractor_forward.1} parent=31 // pred_check
          %p181 = pneg %p34
        $region34: #{cnn_extractor_forward.1} parent=31 // pred_check_branch
          %183 = sbr.rel (%p181) target = $region36
        $region35: #{cnn_extractor_forward.1} parent=31 // pred_region
          %p184 = scmp.lt.s32.totalorder %s14, 1
          %s185 = scalar_select %p184, %s14, 1
          %s186 = smul.addr %s185, 8
          %s187 = scalar_lea.vmem %s0, %s186
        $region36: #{cnn_extractor_forward.1} parent=31 // pred_fallthru
          _
      $region32: #{cnn_extractor_forward.1} parent=5 // pred_fallthru
        _
      %p188 = scmp.le.s32.totalorder 1, %s14
      %p189 = scmp.lt.s32.totalorder %s14, 3
      %p190 = pnand %p188, %p189
      %p191 = pneg %p190
      // Predicated region
      $region37: #{cnn_extractor_forward.1} parent=5 // pred_check
        _
      $region38: #{cnn_extractor_forward.1} parent=5 // pred_check_branch
        %193 = sbr.rel (%p190) target = $region40
      $region39: #{cnn_extractor_forward.1} parent=5 // pred_region
        %s194 = ssub.s32 %s14, 1
        %p195 = scmp.lt.s32.totalorder %s19, 1
        %s196 = scalar_select %p195, %s19, 1
        %s197 = smul.addr %s196, 8
        %s198 = scalar_lea.vmem %s0, %s197
        %p199 = pneg %p40
        %p200 = pneg %p37
        %p201 = pneg %p61
        %p202 = pneg %p58
        %p203 = pneg %p82
        %p204 = pneg %p79
        %p205 = pneg %p103
        %p206 = pneg %p100
        %p207 = pneg %p124
        %p208 = pneg %p121
        %p209 = pneg %p150
        %p210 = pneg %p147
        %s211 = sand.u32 %s137, 1
        %s212 = scalar_lea.sflag [#allocation3], %s211
        %s213 = sand.u32 %s137, 1
        %s214 = smul.addr %s213, 8
        %s215 = scalar_lea.vmem [#allocation2], %s214
        %p216 = scmp.lt.s32.totalorder %s19, 1
        %s217 = scalar_select %p216, %s19, 1
        %s218 = smul.addr %s217, 8
        %s219 = scalar_lea.vmem %s0, %s218
        %v220 = vld [vmem:[%s219] sm:$0xff]
        %v221 = vld [vmem:[%s2] sm:$0xff]
        %v222 = vld [vmem:[%s2 + $0x8] sm:$0xff]
        %v223 = vld [vmem:[%s2 + $0x10] sm:$0xff]
        %v224 = vld [vmem:[%s2 + $0x18] sm:$0xff]
        %v225 = vld [vmem:[%s2 + $0x20] sm:$0xff]
        %v226 = vld [vmem:[%s2 + $0x28] sm:$0xff]
        %v227 = vld [vmem:[%s2 + $0x30] sm:$0xff]
        %v228 = vld [vmem:[%s2 + $0x38] sm:$0xff]
        %v229 = vld [vmem:[%s2 + $0x40] sm:$0xff]
        %v230 = vld [vmem:[%s2 + $0x48] sm:$0xff]
        %v231 = vld [vmem:[%s2 + $0x50] sm:$0xff]
        %v232 = vld [vmem:[%s2 + $0x58] sm:$0xff]
        %v233 = vld [vmem:[%s2 + $0x60] sm:$0xff]
        %v234 = vld [vmem:[%s2 + $0x68] sm:$0xff]
        %v235 = vld [vmem:[%s2 + $0x70] sm:$0xff]
        %v236 = vld [vmem:[%s2 + $0x78] sm:$0xff]
        %v237 = vld [vmem:[%s2 + $0x80] sm:$0xff]
        %v238 = vld [vmem:[%s2 + $0x88] sm:$0xff]
        %v239 = vld [vmem:[%s2 + $0x90] sm:$0xff]
        %v240 = vld [vmem:[%s2 + $0x98] sm:$0xff]
        %v241 = vld [vmem:[%s2 + $0xa0] sm:$0xff]
        %v242 = vld [vmem:[%s2 + $0xa8] sm:$0xff]
        %v243 = vld [vmem:[%s2 + $0xb0] sm:$0xff]
        %v244 = vld [vmem:[%s2 + $0xb8] sm:$0xff]
        %v245 = vld [vmem:[%s2 + $0xc0] sm:$0xff]
        %v246 = vld [vmem:[%s2 + $0xc8] sm:$0xff]
        %v247 = vld [vmem:[%s2 + $0xd0] sm:$0xff]
        %v248 = vld [vmem:[%s2 + $0xd8] sm:$0xff]
        %v249 = vld [vmem:[%s2 + $0xe0] sm:$0xff]
        %v250 = vld [vmem:[%s2 + $0xe8] sm:$0xff]
        %v251 = vld [vmem:[%s2 + $0xf0] sm:$0xff]
        %v252 = vld [vmem:[%s2 + $0xf8] sm:$0xff]
        %v253 = vld [vmem:[%s2 + $0x100] sm:$0xff]
        %v254 = vld [vmem:[%s2 + $0x108] sm:$0xff]
        %v255 = vld [vmem:[%s2 + $0x110] sm:$0xff]
        %v256 = vld [vmem:[%s2 + $0x118] sm:$0xff]
        %v257 = vld [vmem:[%s2 + $0x120] sm:$0xff]
        %v258 = vld [vmem:[%s2 + $0x128] sm:$0xff]
        %v259 = vld [vmem:[%s2 + $0x130] sm:$0xff]
        %v260 = vld [vmem:[%s2 + $0x138] sm:$0xff]
        %v261 = vld [vmem:[%s2 + $0x140] sm:$0xff]
        %v262 = vld [vmem:[%s2 + $0x148] sm:$0xff]
        %v263 = vld [vmem:[%s2 + $0x150] sm:$0xff]
        %v264 = vld [vmem:[%s2 + $0x158] sm:$0xff]
        %v265 = vld [vmem:[%s2 + $0x160] sm:$0xff]
        %v266 = vld [vmem:[%s2 + $0x168] sm:$0xff]
        %v267 = vld [vmem:[%s2 + $0x170] sm:$0xff]
        %v268 = vld [vmem:[%s2 + $0x178] sm:$0xff]
        %v269 = vld [vmem:[%s2 + $0x180] sm:$0xff]
        %v270 = vld [vmem:[%s2 + $0x188] sm:$0xff]
        %v271 = vld [vmem:[%s2 + $0x190] sm:$0xff]
        %v272 = vld [vmem:[%s2 + $0x198] sm:$0xff]
        %v273 = vld [vmem:[%s2 + $0x1a0] sm:$0xff]
        %v274 = vld [vmem:[%s2 + $0x1a8] sm:$0xff]
        %v275 = vld [vmem:[%s2 + $0x1b0] sm:$0xff]
        %v276 = vld [vmem:[%s2 + $0x1b8] sm:$0xff]
        %v277 = vld [vmem:[%s2 + $0x1c0] sm:$0xff]
        %v278 = vld [vmem:[%s2 + $0x1c8] sm:$0xff]
        %v279 = vld [vmem:[%s2 + $0x1d0] sm:$0xff]
        %v280 = vld [vmem:[%s2 + $0x1d8] sm:$0xff]
        %v281 = vld [vmem:[%s2 + $0x1e0] sm:$0xff]
        %v282 = vld [vmem:[%s2 + $0x1e8] sm:$0xff]
        %v283 = vld [vmem:[%s2 + $0x1f0] sm:$0xff]
        %v284 = vld [vmem:[%s2 + $0x1f8] sm:$0xff]
        %v285 = vld [vmem:[%s2 + $0x200] sm:$0xff]
        %v286 = vld [vmem:[%s2 + $0x208] sm:$0xff]
        %v287 = vld [vmem:[%s2 + $0x210] sm:$0xff]
        %v288 = vld [vmem:[%s2 + $0x218] sm:$0xff]
        %v289 = vld [vmem:[%s2 + $0x220] sm:$0xff]
        %v290 = vld [vmem:[%s2 + $0x228] sm:$0xff]
        %v291 = vld [vmem:[%s2 + $0x230] sm:$0xff]
        %v292 = vld [vmem:[%s2 + $0x238] sm:$0xff]
        %v293 = vld [vmem:[%s2 + $0x240] sm:$0xff]
        %v294 = vld [vmem:[%s2 + $0x248] sm:$0xff]
        %v295 = vld [vmem:[%s2 + $0x250] sm:$0xff]
        %v296 = vld [vmem:[%s2 + $0x258] sm:$0xff]
        %v297 = vld [vmem:[%s2 + $0x260] sm:$0xff]
        %v298 = vld [vmem:[%s2 + $0x268] sm:$0xff]
        %v299 = vld [vmem:[%s2 + $0x270] sm:$0xff]
        %v300 = vld [vmem:[%s2 + $0x278] sm:$0xff]
        %v301 = vld [vmem:[%s2 + $0x280] sm:$0xff]
        %v302 = vld [vmem:[%s2 + $0x288] sm:$0xff]
        %v303 = vld [vmem:[%s2 + $0x290] sm:$0xff]
        %v304 = vld [vmem:[%s2 + $0x298] sm:$0xff]
        %v305 = vld [vmem:[%s2 + $0x2a0] sm:$0xff]
        %v306 = vld [vmem:[%s2 + $0x2a8] sm:$0xff]
        %v307 = vld [vmem:[%s2 + $0x2b0] sm:$0xff]
        %v308 = vld [vmem:[%s2 + $0x2b8] sm:$0xff]
        %v309 = vld [vmem:[%s2 + $0x2c0] sm:$0xff]
        %v310 = vld [vmem:[%s2 + $0x2c8] sm:$0xff]
        %v311 = vld [vmem:[%s2 + $0x2d0] sm:$0xff]
        %v312 = vld [vmem:[%s2 + $0x2d8] sm:$0xff]
        %v313 = vld [vmem:[%s2 + $0x2e0] sm:$0xff]
        %v314 = vld [vmem:[%s2 + $0x2e8] sm:$0xff]
        %v315 = vld [vmem:[%s2 + $0x2f0] sm:$0xff]
        %v316 = vld [vmem:[%s2 + $0x2f8] sm:$0xff]
        %v317 = vld [vmem:[%s2 + $0x300] sm:$0xff]
        %v318 = vld [vmem:[%s2 + $0x308] sm:$0xff]
        %v319 = vld [vmem:[%s2 + $0x310] sm:$0xff]
        %v320 = vld [vmem:[%s2 + $0x318] sm:$0xff]
        %v321 = vld [vmem:[%s2 + $0x320] sm:$0xff]
        %v322 = vld [vmem:[%s2 + $0x328] sm:$0xff]
        %v323 = vld [vmem:[%s2 + $0x330] sm:$0xff]
        %v324 = vld [vmem:[%s2 + $0x338] sm:$0xff]
        %v325 = vld [vmem:[%s2 + $0x340] sm:$0xff]
        %v326 = vld [vmem:[%s2 + $0x348] sm:$0xff]
        %v327 = vld [vmem:[%s2 + $0x350] sm:$0xff]
        %v328 = vld [vmem:[%s2 + $0x358] sm:$0xff]
        %v329 = vld [vmem:[%s2 + $0x360] sm:$0xff]
        %v330 = vld [vmem:[%s2 + $0x368] sm:$0xff]
        %v331 = vld [vmem:[%s2 + $0x370] sm:$0xff]
        %v332 = vld [vmem:[%s2 + $0x378] sm:$0xff]
        %v333 = vld [vmem:[%s2 + $0x380] sm:$0xff]
        %v334 = vld [vmem:[%s2 + $0x388] sm:$0xff]
        %v335 = vld [vmem:[%s2 + $0x390] sm:$0xff]
        %v336 = vld [vmem:[%s2 + $0x398] sm:$0xff]
        %v337 = vld [vmem:[%s2 + $0x3a0] sm:$0xff]
        %v338 = vld [vmem:[%s2 + $0x3a8] sm:$0xff]
        %v339 = vld [vmem:[%s2 + $0x3b0] sm:$0xff]
        %v340 = vld [vmem:[%s2 + $0x3b8] sm:$0xff]
        %v341 = vld [vmem:[%s2 + $0x3c0] sm:$0xff]
        %v342 = vld [vmem:[%s2 + $0x3c8] sm:$0xff]
        %v343 = vld [vmem:[%s2 + $0x3d0] sm:$0xff]
        %v344 = vld [vmem:[%s2 + $0x3d8] sm:$0xff]
        %v345 = vld [vmem:[%s2 + $0x3e0] sm:$0xff]
        %v346 = vld [vmem:[%s2 + $0x3e8] sm:$0xff]
        %v347 = vld [vmem:[%s2 + $0x3f0] sm:$0xff]
        %v348 = vld [vmem:[%s2 + $0x3f8] sm:$0xff]
        %v349 = vld [vmem:[%s2 + $0x400] sm:$0xff]
        %v350 = vld [vmem:[%s2 + $0x408] sm:$0xff]
        %v351 = vld [vmem:[%s2 + $0x410] sm:$0xff]
        %v352 = vld [vmem:[%s2 + $0x418] sm:$0xff]
        %v353 = vld [vmem:[%s2 + $0x420] sm:$0xff]
        %v354 = vld [vmem:[%s2 + $0x428] sm:$0xff]
        %v355 = vld [vmem:[%s2 + $0x430] sm:$0xff]
        %v356 = vld [vmem:[%s2 + $0x438] sm:$0xff]
        %v357 = vld [vmem:[%s2 + $0x440] sm:$0xff]
        %v358 = vld [vmem:[%s2 + $0x448] sm:$0xff]
        %v359 = vld [vmem:[%s2 + $0x450] sm:$0xff]
        %v360 = vld [vmem:[%s2 + $0x458] sm:$0xff]
        %v361 = vld [vmem:[%s2 + $0x460] sm:$0xff]
        %v362 = vld [vmem:[%s2 + $0x468] sm:$0xff]
        %v363 = vld [vmem:[%s2 + $0x470] sm:$0xff]
        %v364 = vld [vmem:[%s2 + $0x478] sm:$0xff]
        %v365 = vld [vmem:[%s2 + $0x480] sm:$0xff]
        %v366 = vld [vmem:[%s2 + $0x488] sm:$0xff]
        %v367 = vld [vmem:[%s2 + $0x490] sm:$0xff]
        %v368 = vld [vmem:[%s2 + $0x498] sm:$0xff]
        %v369 = vld [vmem:[%s2 + $0x4a0] sm:$0xff]
        %v370 = vld [vmem:[%s2 + $0x4a8] sm:$0xff]
        %v371 = vld [vmem:[%s2 + $0x4b0] sm:$0xff]
        %v372 = vld [vmem:[%s2 + $0x4b8] sm:$0xff]
        %v373 = vld [vmem:[%s2 + $0x4c0] sm:$0xff]
        %v374 = vld [vmem:[%s2 + $0x4c8] sm:$0xff]
        %v375 = vld [vmem:[%s2 + $0x4d0] sm:$0xff]
        %v376 = vld [vmem:[%s2 + $0x4d8] sm:$0xff]
        %v377 = vld [vmem:[%s2 + $0x4e0] sm:$0xff]
        %v378 = vld [vmem:[%s2 + $0x4e8] sm:$0xff]
        %v379 = vld [vmem:[%s2 + $0x4f0] sm:$0xff]
        %v380 = vld [vmem:[%s2 + $0x4f8] sm:$0xff]
        %v381 = vld [vmem:[%s1] sm:$0xff]
        %v382 = vld [vmem:[%s1 + $0x8] sm:$0xff]
        %v383 = vld [vmem:[%s1 + $0x10] sm:$0xff]
        %v384 = vld [vmem:[%s1 + $0x18] sm:$0xff]
        %v385 = vld [vmem:[%s1 + $0x20] sm:$0xff]
        %v386 = vld [vmem:[%s1 + $0x28] sm:$0xff]
        %v387 = vld [vmem:[%s1 + $0x30] sm:$0xff]
        %v388 = vld [vmem:[%s1 + $0x38] sm:$0xff]
        %v389 = vld [vmem:[%s1 + $0x40] sm:$0xff]
        %v390 = vld [vmem:[%s1 + $0x48] sm:$0xff]
        %391 = vmatprep.subr.mxu0 %v222
        %392 = vmatpush1.msra.mxu0 %v221
        %393 = vmatprep.subr.mxu0 %v232
        %394 = vmatpush1.msra.mxu0 %v231
        %395 = vmatprep.subr.mxu0 %v242
        %396 = vmatpush1.msra.mxu0 %v241
        %397 = vmatprep.subr.mxu0 %v252
        %398 = vmatpush1.msra.mxu0 %v251
        %399 = vmatprep.subr.mxu0 %v262
        %400 = vmatpush1.msra.mxu0 %v261
        %401 = vmatprep.subr.mxu0 %v272
        %402 = vmatpush1.msra.mxu0 %v271
        %403 = vmatprep.subr.mxu0 %v282
        %404 = vmatpush1.msra.mxu0 %v281
        %405 = vmatprep.subr.mxu0 %v292
        %406 = vmatpush1.msra.mxu0 %v291
        %407 = vmatprep.subr.mxu0 %v302
        %408 = vmatpush1.msra.mxu0 %v301
        %409 = vmatprep.subr.mxu0 %v312
        %410 = vmatpush1.msra.mxu0 %v311
        %411 = vmatprep.subr.mxu0 %v322
        %412 = vmatpush1.msra.mxu0 %v321
        %413 = vmatprep.subr.mxu0 %v332
        %414 = vmatpush1.msra.mxu0 %v331
        %415 = vmatprep.subr.mxu0 %v342
        %416 = vmatpush1.msra.mxu0 %v341
        %417 = vmatprep.subr.mxu0 %v352
        %418 = vmatpush1.msra.mxu0 %v351
        %419 = vmatprep.subr.mxu0 %v362
        %420 = vmatpush1.msra.mxu0 %v361
        %421 = vmatprep.subr.mxu0 %v372
        %422 = vmatpush1.msra.mxu0 %v371
        %423 = vmatprep.subr.mxu0 0.0
        %424 = vmatpush1.msra.mxu0 0.0
        %425 = vmatprep.subr.mxu0 0.0
        %426 = vmatpush1.msra.mxu0 0.0
        %427 = vmatprep.subr.mxu0 0.0
        %428 = vmatpush1.msra.mxu0 0.0
        %429 = vmatprep.subr.mxu0 0.0
        %430 = vmatpush1.msra.mxu0 0.0
        %431 = vmatprep.subr.mxu0 0.0
        %432 = vmatpush1.msra.mxu0 0.0
        %433 = vmatprep.subr.mxu0 0.0
        %434 = vmatpush1.msra.mxu0 0.0
        %435 = vmatprep.subr.mxu0 0.0
        %436 = vmatpush1.msra.mxu0 0.0
        %437 = vmatprep.subr.mxu0 0.0
        %438 = vmatpush1.msra.mxu0 0.0
        %439 = vmatprep.subr.mxu0 0.0
        %440 = vmatpush1.msra.mxu0 0.0
        %441 = vmatprep.subr.mxu0 0.0
        %442 = vmatpush1.msra.mxu0 0.0
        %443 = vmatprep.subr.mxu0 0.0
        %444 = vmatpush1.msra.mxu0 0.0
        %445 = vmatprep.subr.mxu0 0.0
        %446 = vmatpush1.msra.mxu0 0.0
        %447 = vmatprep.subr.mxu0 0.0
        %448 = vmatpush1.msra.mxu0 0.0
        %449 = vmatprep.subr.mxu0 0.0
        %450 = vmatpush1.msra.mxu0 0.0
        %451 = vmatprep.subr.mxu0 0.0
        %452 = vmatpush1.msra.mxu0 0.0
        %453 = vmatprep.subr.mxu0 0.0
        %454 = vmatpush1.msra.mxu0 0.0
        %455 = vmatprep.mubr.f32.mxu0 0.0
        %456 = vmatmul.mubr.f32.gmra.mrb[0].mxu0 %v220
        %v457 = vpop.f32.mrb[0].mxu0
        %v458 = vadd.f32 %v381, %v457
        %v459 = vpop.f32.mrb[0].mxu0
        %v460 = vadd.f32 %v382, %v459
        %461 = vdwg.mxu0
        %462 = vmatprep.subr.mxu0 %v224
        %463 = vmatpush1.msra.mxu0 %v223
        %464 = vmatprep.subr.mxu0 %v234
        %465 = vmatpush1.msra.mxu0 %v233
        %466 = vmatprep.subr.mxu0 %v244
        %467 = vmatpush1.msra.mxu0 %v243
        %468 = vmatprep.subr.mxu0 %v254
        %469 = vmatpush1.msra.mxu0 %v253
        %470 = vmatprep.subr.mxu0 %v264
        %471 = vmatpush1.msra.mxu0 %v263
        %472 = vmatprep.subr.mxu0 %v274
        %473 = vmatpush1.msra.mxu0 %v273
        %474 = vmatprep.subr.mxu0 %v284
        %475 = vmatpush1.msra.mxu0 %v283
        %476 = vmatprep.subr.mxu0 %v294
        %477 = vmatpush1.msra.mxu0 %v293
        %478 = vmatprep.subr.mxu0 %v304
        %479 = vmatpush1.msra.mxu0 %v303
        %480 = vmatprep.subr.mxu0 %v314
        %481 = vmatpush1.msra.mxu0 %v313
        %482 = vmatprep.subr.mxu0 %v324
        %483 = vmatpush1.msra.mxu0 %v323
        %484 = vmatprep.subr.mxu0 %v334
        %485 = vmatpush1.msra.mxu0 %v333
        %486 = vmatprep.subr.mxu0 %v344
        %487 = vmatpush1.msra.mxu0 %v343
        %488 = vmatprep.subr.mxu0 %v354
        %489 = vmatpush1.msra.mxu0 %v353
        %490 = vmatprep.subr.mxu0 %v364
        %491 = vmatpush1.msra.mxu0 %v363
        %492 = vmatprep.subr.mxu0 %v374
        %493 = vmatpush1.msra.mxu0 %v373
        %494 = vmatprep.subr.mxu0 0.0
        %495 = vmatpush1.msra.mxu0 0.0
        %496 = vmatprep.subr.mxu0 0.0
        %497 = vmatpush1.msra.mxu0 0.0
        %498 = vmatprep.subr.mxu0 0.0
        %499 = vmatpush1.msra.mxu0 0.0
        %500 = vmatprep.subr.mxu0 0.0
        %501 = vmatpush1.msra.mxu0 0.0
        %502 = vmatprep.subr.mxu0 0.0
        %503 = vmatpush1.msra.mxu0 0.0
        %504 = vmatprep.subr.mxu0 0.0
        %505 = vmatpush1.msra.mxu0 0.0
        %506 = vmatprep.subr.mxu0 0.0
        %507 = vmatpush1.msra.mxu0 0.0
        %508 = vmatprep.subr.mxu0 0.0
        %509 = vmatpush1.msra.mxu0 0.0
        %510 = vmatprep.subr.mxu0 0.0
        %511 = vmatpush1.msra.mxu0 0.0
        %512 = vmatprep.subr.mxu0 0.0
        %513 = vmatpush1.msra.mxu0 0.0
        %514 = vmatprep.subr.mxu0 0.0
        %515 = vmatpush1.msra.mxu0 0.0
        %516 = vmatprep.subr.mxu0 0.0
        %517 = vmatpush1.msra.mxu0 0.0
        %518 = vmatprep.subr.mxu0 0.0
        %519 = vmatpush1.msra.mxu0 0.0
        %520 = vmatprep.subr.mxu0 0.0
        %521 = vmatpush1.msra.mxu0 0.0
        %522 = vmatprep.subr.mxu0 0.0
        %523 = vmatpush1.msra.mxu0 0.0
        %524 = vmatprep.subr.mxu0 0.0
        %525 = vmatpush1.msra.mxu0 0.0
        %526 = vmatprep.mubr.f32.mxu0 0.0
        %527 = vmatmul.mubr.f32.gmra.mrb[0].mxu0 %v220
        %v528 = vpop.f32.mrb[0].mxu0
        %v529 = vadd.f32 %v383, %v528
        %v530 = vpop.f32.mrb[0].mxu0
        %v531 = vadd.f32 %v384, %v530
        %532 = vdwg.mxu0
        %533 = vmatprep.subr.mxu0 %v226
        %534 = vmatpush1.msra.mxu0 %v225
        %535 = vmatprep.subr.mxu0 %v236
        %536 = vmatpush1.msra.mxu0 %v235
        %537 = vmatprep.subr.mxu0 %v246
        %538 = vmatpush1.msra.mxu0 %v245
        %539 = vmatprep.subr.mxu0 %v256
        %540 = vmatpush1.msra.mxu0 %v255
        %541 = vmatprep.subr.mxu0 %v266
        %542 = vmatpush1.msra.mxu0 %v265
        %543 = vmatprep.subr.mxu0 %v276
        %544 = vmatpush1.msra.mxu0 %v275
        %545 = vmatprep.subr.mxu0 %v286
        %546 = vmatpush1.msra.mxu0 %v285
        %547 = vmatprep.subr.mxu0 %v296
        %548 = vmatpush1.msra.mxu0 %v295
        %549 = vmatprep.subr.mxu0 %v306
        %550 = vmatpush1.msra.mxu0 %v305
        %551 = vmatprep.subr.mxu0 %v316
        %552 = vmatpush1.msra.mxu0 %v315
        %553 = vmatprep.subr.mxu0 %v326
        %554 = vmatpush1.msra.mxu0 %v325
        %555 = vmatprep.subr.mxu0 %v336
        %556 = vmatpush1.msra.mxu0 %v335
        %557 = vmatprep.subr.mxu0 %v346
        %558 = vmatpush1.msra.mxu0 %v345
        %559 = vmatprep.subr.mxu0 %v356
        %560 = vmatpush1.msra.mxu0 %v355
        %561 = vmatprep.subr.mxu0 %v366
        %562 = vmatpush1.msra.mxu0 %v365
        %563 = vmatprep.subr.mxu0 %v376
        %564 = vmatpush1.msra.mxu0 %v375
        %565 = vmatprep.subr.mxu0 0.0
        %566 = vmatpush1.msra.mxu0 0.0
        %567 = vmatprep.subr.mxu0 0.0
        %568 = vmatpush1.msra.mxu0 0.0
        %569 = vmatprep.subr.mxu0 0.0
        %570 = vmatpush1.msra.mxu0 0.0
        %571 = vmatprep.subr.mxu0 0.0
        %572 = vmatpush1.msra.mxu0 0.0
        %573 = vmatprep.subr.mxu0 0.0
        %574 = vmatpush1.msra.mxu0 0.0
        %575 = vmatprep.subr.mxu0 0.0
        %576 = vmatpush1.msra.mxu0 0.0
        %577 = vmatprep.subr.mxu0 0.0
        %578 = vmatpush1.msra.mxu0 0.0
        %579 = vmatprep.subr.mxu0 0.0
        %580 = vmatpush1.msra.mxu0 0.0
        %581 = vmatprep.subr.mxu0 0.0
        %582 = vmatpush1.msra.mxu0 0.0
        %583 = vmatprep.subr.mxu0 0.0
        %584 = vmatpush1.msra.mxu0 0.0
        %585 = vmatprep.subr.mxu0 0.0
        %586 = vmatpush1.msra.mxu0 0.0
        %587 = vmatprep.subr.mxu0 0.0
        %588 = vmatpush1.msra.mxu0 0.0
        %589 = vmatprep.subr.mxu0 0.0
        %590 = vmatpush1.msra.mxu0 0.0
        %591 = vmatprep.subr.mxu0 0.0
        %592 = vmatpush1.msra.mxu0 0.0
        %593 = vmatprep.subr.mxu0 0.0
        %594 = vmatpush1.msra.mxu0 0.0
        %595 = vmatprep.subr.mxu0 0.0
        %596 = vmatpush1.msra.mxu0 0.0
        %597 = vmatprep.mubr.f32.mxu0 0.0
        %598 = vmatmul.mubr.f32.gmra.mrb[0].mxu0 %v220
        %v599 = vpop.f32.mrb[0].mxu0
        %v600 = vadd.f32 %v385, %v599
        %v601 = vpop.f32.mrb[0].mxu0
        %v602 = vadd.f32 %v386, %v601
        %603 = vdwg.mxu0
        %604 = vmatprep.subr.mxu0 %v228
        %605 = vmatpush1.msra.mxu0 %v227
        %606 = vmatprep.subr.mxu0 %v238
        %607 = vmatpush1.msra.mxu0 %v237
        %608 = vmatprep.subr.mxu0 %v248
        %609 = vmatpush1.msra.mxu0 %v247
        %610 = vmatprep.subr.mxu0 %v258
        %611 = vmatpush1.msra.mxu0 %v257
        %612 = vmatprep.subr.mxu0 %v268
        %613 = vmatpush1.msra.mxu0 %v267
        %614 = vmatprep.subr.mxu0 %v278
        %615 = vmatpush1.msra.mxu0 %v277
        %616 = vmatprep.subr.mxu0 %v288
        %617 = vmatpush1.msra.mxu0 %v287
        %618 = vmatprep.subr.mxu0 %v298
        %619 = vmatpush1.msra.mxu0 %v297
        %620 = vmatprep.subr.mxu0 %v308
        %621 = vmatpush1.msra.mxu0 %v307
        %622 = vmatprep.subr.mxu0 %v318
        %623 = vmatpush1.msra.mxu0 %v317
        %624 = vmatprep.subr.mxu0 %v328
        %625 = vmatpush1.msra.mxu0 %v327
        %626 = vmatprep.subr.mxu0 %v338
        %627 = vmatpush1.msra.mxu0 %v337
        %628 = vmatprep.subr.mxu0 %v348
        %629 = vmatpush1.msra.mxu0 %v347
        %630 = vmatprep.subr.mxu0 %v358
        %631 = vmatpush1.msra.mxu0 %v357
        %632 = vmatprep.subr.mxu0 %v368
        %633 = vmatpush1.msra.mxu0 %v367
        %634 = vmatprep.subr.mxu0 %v378
        %635 = vmatpush1.msra.mxu0 %v377
        %636 = vmatprep.subr.mxu0 0.0
        %637 = vmatpush1.msra.mxu0 0.0
        %638 = vmatprep.subr.mxu0 0.0
        %639 = vmatpush1.msra.mxu0 0.0
        %640 = vmatprep.subr.mxu0 0.0
        %641 = vmatpush1.msra.mxu0 0.0
        %642 = vmatprep.subr.mxu0 0.0
        %643 = vmatpush1.msra.mxu0 0.0
        %644 = vmatprep.subr.mxu0 0.0
        %645 = vmatpush1.msra.mxu0 0.0
        %646 = vmatprep.subr.mxu0 0.0
        %647 = vmatpush1.msra.mxu0 0.0
        %648 = vmatprep.subr.mxu0 0.0
        %649 = vmatpush1.msra.mxu0 0.0
        %650 = vmatprep.subr.mxu0 0.0
        %651 = vmatpush1.msra.mxu0 0.0
        %652 = vmatprep.subr.mxu0 0.0
        %653 = vmatpush1.msra.mxu0 0.0
        %654 = vmatprep.subr.mxu0 0.0
        %655 = vmatpush1.msra.mxu0 0.0
        %656 = vmatprep.subr.mxu0 0.0
        %657 = vmatpush1.msra.mxu0 0.0
        %658 = vmatprep.subr.mxu0 0.0
        %659 = vmatpush1.msra.mxu0 0.0
        %660 = vmatprep.subr.mxu0 0.0
        %661 = vmatpush1.msra.mxu0 0.0
        %662 = vmatprep.subr.mxu0 0.0
        %663 = vmatpush1.msra.mxu0 0.0
        %664 = vmatprep.subr.mxu0 0.0
        %665 = vmatpush1.msra.mxu0 0.0
        %666 = vmatprep.subr.mxu0 0.0
        %667 = vmatpush1.msra.mxu0 0.0
        %668 = vmatprep.mubr.f32.mxu0 0.0
        %669 = vmatmul.mubr.f32.gmra.mrb[0].mxu0 %v220
        %v670 = vpop.f32.mrb[0].mxu0
        %v671 = vadd.f32 %v387, %v670
        %v672 = vpop.f32.mrb[0].mxu0
        %v673 = vadd.f32 %v388, %v672
        %674 = vdwg.mxu0
        %675 = vmatprep.subr.mxu0 %v230
        %676 = vmatpush1.msra.mxu0 %v229
        %677 = vmatprep.subr.mxu0 %v240
        %678 = vmatpush1.msra.mxu0 %v239
        %679 = vmatprep.subr.mxu0 %v250
        %680 = vmatpush1.msra.mxu0 %v249
        %681 = vmatprep.subr.mxu0 %v260
        %682 = vmatpush1.msra.mxu0 %v259
        %683 = vmatprep.subr.mxu0 %v270
        %684 = vmatpush1.msra.mxu0 %v269
        %685 = vmatprep.subr.mxu0 %v280
        %686 = vmatpush1.msra.mxu0 %v279
        %687 = vmatprep.subr.mxu0 %v290
        %688 = vmatpush1.msra.mxu0 %v289
        %689 = vmatprep.subr.mxu0 %v300
        %690 = vmatpush1.msra.mxu0 %v299
        %691 = vmatprep.subr.mxu0 %v310
        %692 = vmatpush1.msra.mxu0 %v309
        %693 = vmatprep.subr.mxu0 %v320
        %694 = vmatpush1.msra.mxu0 %v319
        %695 = vmatprep.subr.mxu0 %v330
        %696 = vmatpush1.msra.mxu0 %v329
        %697 = vmatprep.subr.mxu0 %v340
        %698 = vmatpush1.msra.mxu0 %v339
        %699 = vmatprep.subr.mxu0 %v350
        %700 = vmatpush1.msra.mxu0 %v349
        %701 = vmatprep.subr.mxu0 %v360
        %702 = vmatpush1.msra.mxu0 %v359
        %703 = vmatprep.subr.mxu0 %v370
        %704 = vmatpush1.msra.mxu0 %v369
        %705 = vmatprep.subr.mxu0 %v380
        %706 = vmatpush1.msra.mxu0 %v379
        %707 = vmatprep.subr.mxu0 0.0
        %708 = vmatpush1.msra.mxu0 0.0
        %709 = vmatprep.subr.mxu0 0.0
        %710 = vmatpush1.msra.mxu0 0.0
        %711 = vmatprep.subr.mxu0 0.0
        %712 = vmatpush1.msra.mxu0 0.0
        %713 = vmatprep.subr.mxu0 0.0
        %714 = vmatpush1.msra.mxu0 0.0
        %715 = vmatprep.subr.mxu0 0.0
        %716 = vmatpush1.msra.mxu0 0.0
        %717 = vmatprep.subr.mxu0 0.0
        %718 = vmatpush1.msra.mxu0 0.0
        %719 = vmatprep.subr.mxu0 0.0
        %720 = vmatpush1.msra.mxu0 0.0
        %721 = vmatprep.subr.mxu0 0.0
        %722 = vmatpush1.msra.mxu0 0.0
        %723 = vmatprep.subr.mxu0 0.0
        %724 = vmatpush1.msra.mxu0 0.0
        %725 = vmatprep.subr.mxu0 0.0
        %726 = vmatpush1.msra.mxu0 0.0
        %727 = vmatprep.subr.mxu0 0.0
        %728 = vmatpush1.msra.mxu0 0.0
        %729 = vmatprep.subr.mxu0 0.0
        %730 = vmatpush1.msra.mxu0 0.0
        %731 = vmatprep.subr.mxu0 0.0
        %732 = vmatpush1.msra.mxu0 0.0
        %733 = vmatprep.subr.mxu0 0.0
        %734 = vmatpush1.msra.mxu0 0.0
        %735 = vmatprep.subr.mxu0 0.0
        %736 = vmatpush1.msra.mxu0 0.0
        %737 = vmatprep.subr.mxu0 0.0
        %738 = vmatpush1.msra.mxu0 0.0
        %739 = vmatprep.mubr.f32.mxu0 0.0
        %740 = vmatmul.mubr.f32.gmra.mrb[0].mxu0 %v220
        %v741 = vpop.f32.mrb[0].mxu0
        %v742 = vadd.f32 %v389, %v741
        %v743 = vpop.f32.mrb[0].mxu0
        %v744 = vadd.f32 %v390, %v743
        %745 = vdwg.mxu0
        %v746 = vand.u32 2147483647, %v458
        %v747 = vand.u32 2147483647, %v460
        %v748 = vand.u32 2147483647, %v529
        %v749 = vand.u32 2147483647, %v531
        %v750 = vand.u32 2147483647, %v600
        %v751 = vand.u32 2147483647, %v602
        %v752 = vand.u32 2147483647, %v671
        %v753 = vand.u32 2147483647, %v673
        %v754 = vand.u32 2147483647, %v742
        %v755 = vand.u32 2147483647, %v744
        %v756 = vsub.f32 0.0, %v746
        %v757 = vsub.f32 0.0, %v747
        %v758 = vsub.f32 0.0, %v748
        %v759 = vsub.f32 0.0, %v749
        %v760 = vsub.f32 0.0, %v750
        %v761 = vsub.f32 0.0, %v751
        %v762 = vsub.f32 0.0, %v752
        %v763 = vsub.f32 0.0, %v753
        %v764 = vsub.f32 0.0, %v754
        %v765 = vsub.f32 0.0, %v755
        %v766 = vmul.f32 %v756, 1.442695
        %v767 = vpow.pop %v766
        %v768 = vmul.f32 %v757, 1.442695
        %v769 = vpow.pop %v768
        %v770 = vmul.f32 %v758, 1.442695
        %v771 = vpow.pop %v770
        %v772 = vmul.f32 %v759, 1.442695
        %v773 = vpow.pop %v772
        %v774 = vmul.f32 %v760, 1.442695
        %v775 = vpow.pop %v774
        %v776 = vmul.f32 %v761, 1.442695
        %v777 = vpow.pop %v776
        %v778 = vmul.f32 %v762, 1.442695
        %v779 = vpow.pop %v778
        %v780 = vmul.f32 %v763, 1.442695
        %v781 = vpow.pop %v780
        %v782 = vmul.f32 %v764, 1.442695
        %v783 = vpow.pop %v782
        %v784 = vmul.f32 %v765, 1.442695
        %v785 = vpow.pop %v784
        %vm786 = vcmp.gt.f32.partialorder %v458, 0.0
        %vm787 = vcmp.gt.f32.partialorder %v460, 0.0
        %vm788 = vcmp.gt.f32.partialorder %v529, 0.0
        %vm789 = vcmp.gt.f32.partialorder %v531, 0.0
        %vm790 = vcmp.gt.f32.partialorder %v600, 0.0
        %vm791 = vcmp.gt.f32.partialorder %v602, 0.0
        %vm792 = vcmp.gt.f32.partialorder %v671, 0.0
        %vm793 = vcmp.gt.f32.partialorder %v673, 0.0
        %vm794 = vcmp.gt.f32.partialorder %v742, 0.0
        %vm795 = vcmp.gt.f32.partialorder %v744, 0.0
        %v796 = vmul.f32 %v767, 2.0
        %v797 = vmul.f32 %v769, 2.0
        %v798 = vmul.f32 %v771, 2.0
        %v799 = vmul.f32 %v773, 2.0
        %v800 = vmul.f32 %v775, 2.0
        %v801 = vmul.f32 %v777, 2.0
        %v802 = vmul.f32 %v779, 2.0
        %v803 = vmul.f32 %v781, 2.0
        %v804 = vmul.f32 %v783, 2.0
        %v805 = vmul.f32 %v785, 2.0
        %v806 = vadd.f32 %v796, 1.0
        %v807 = vadd.f32 %v797, 1.0
        %v808 = vadd.f32 %v798, 1.0
        %v809 = vadd.f32 %v799, 1.0
        %v810 = vadd.f32 %v800, 1.0
        %v811 = vadd.f32 %v801, 1.0
        %v812 = vadd.f32 %v802, 1.0
        %v813 = vadd.f32 %v803, 1.0
        %v814 = vadd.f32 %v804, 1.0
        %v815 = vadd.f32 %v805, 1.0
        %v816 = vadd.f32 %v767, 2.0
        %v817 = vadd.f32 %v769, 2.0
        %v818 = vadd.f32 %v771, 2.0
        %v819 = vadd.f32 %v773, 2.0
        %v820 = vadd.f32 %v775, 2.0
        %v821 = vadd.f32 %v777, 2.0
        %v822 = vadd.f32 %v779, 2.0
        %v823 = vadd.f32 %v781, 2.0
        %v824 = vadd.f32 %v783, 2.0
        %v825 = vadd.f32 %v785, 2.0
        %v826 = vmul.f32 %v767, %v816
        %v827 = vmul.f32 %v769, %v817
        %v828 = vmul.f32 %v771, %v818
        %v829 = vmul.f32 %v773, %v819
        %v830 = vmul.f32 %v775, %v820
        %v831 = vmul.f32 %v777, %v821
        %v832 = vmul.f32 %v779, %v822
        %v833 = vmul.f32 %v781, %v823
        %v834 = vmul.f32 %v783, %v824
        %v835 = vmul.f32 %v785, %v825
        %v836 = vsel %vm786, %v806, %v826
        %v837 = vsel %vm787, %v807, %v827
        %v838 = vsel %vm788, %v808, %v828
        %v839 = vsel %vm789, %v809, %v829
        %v840 = vsel %vm790, %v810, %v830
        %v841 = vsel %vm791, %v811, %v831
        %v842 = vsel %vm792, %v812, %v832
        %v843 = vsel %vm793, %v813, %v833
        %v844 = vsel %vm794, %v814, %v834
        %v845 = vsel %vm795, %v815, %v835
        %v846 = vmul.f32 %v796, %v767
        %v847 = vmul.f32 %v797, %v769
        %v848 = vmul.f32 %v798, %v771
        %v849 = vmul.f32 %v799, %v773
        %v850 = vmul.f32 %v800, %v775
        %v851 = vmul.f32 %v801, %v777
        %v852 = vmul.f32 %v802, %v779
        %v853 = vmul.f32 %v803, %v781
        %v854 = vmul.f32 %v804, %v783
        %v855 = vmul.f32 %v805, %v785
        %v856 = vsel %vm786, %v846, 2.0
        %v857 = vsel %vm787, %v847, 2.0
        %v858 = vsel %vm788, %v848, 2.0
        %v859 = vsel %vm789, %v849, 2.0
        %v860 = vsel %vm790, %v850, 2.0
        %v861 = vsel %vm791, %v851, 2.0
        %v862 = vsel %vm792, %v852, 2.0
        %v863 = vsel %vm793, %v853, 2.0
        %v864 = vsel %vm794, %v854, 2.0
        %v865 = vsel %vm795, %v855, 2.0
        %v866 = vadd.f32 %v836, %v856
        %v867 = vadd.f32 %v837, %v857
        %v868 = vadd.f32 %v838, %v858
        %v869 = vadd.f32 %v839, %v859
        %v870 = vadd.f32 %v840, %v860
        %v871 = vadd.f32 %v841, %v861
        %v872 = vadd.f32 %v842, %v862
        %v873 = vadd.f32 %v843, %v863
        %v874 = vadd.f32 %v844, %v864
        %v875 = vadd.f32 %v845, %v865
        %v876 = vrcp.pop %v866
        %v877 = vrcp.pop %v867
        %v878 = vrcp.pop %v868
        %v879 = vrcp.pop %v869
        %v880 = vrcp.pop %v870
        %v881 = vrcp.pop %v871
        %v882 = vrcp.pop %v872
        %v883 = vrcp.pop %v873
        %v884 = vrcp.pop %v874
        %v885 = vrcp.pop %v875
        %v886 = vmul.f32 %v866, %v876
        %v887 = vmul.f32 %v867, %v877
        %v888 = vmul.f32 %v868, %v878
        %v889 = vmul.f32 %v869, %v879
        %v890 = vmul.f32 %v870, %v880
        %v891 = vmul.f32 %v871, %v881
        %v892 = vmul.f32 %v872, %v882
        %v893 = vmul.f32 %v873, %v883
        %v894 = vmul.f32 %v874, %v884
        %v895 = vmul.f32 %v875, %v885
        %v896 = vsub.f32 2.0, %v886
        %v897 = vsub.f32 2.0, %v887
        %v898 = vsub.f32 2.0, %v888
        %v899 = vsub.f32 2.0, %v889
        %v900 = vsub.f32 2.0, %v890
        %v901 = vsub.f32 2.0, %v891
        %v902 = vsub.f32 2.0, %v892
        %v903 = vsub.f32 2.0, %v893
        %v904 = vsub.f32 2.0, %v894
        %v905 = vsub.f32 2.0, %v895
        %v906 = vmul.f32 %v876, %v896
        %v907 = vmul.f32 %v877, %v897
        %v908 = vmul.f32 %v878, %v898
        %v909 = vmul.f32 %v879, %v899
        %v910 = vmul.f32 %v880, %v900
        %v911 = vmul.f32 %v881, %v901
        %v912 = vmul.f32 %v882, %v902
        %v913 = vmul.f32 %v883, %v903
        %v914 = vmul.f32 %v884, %v904
        %v915 = vmul.f32 %v885, %v905
        %v916 = vmul.f32 %v458, %v836
        %v917 = vmul.f32 %v460, %v837
        %v918 = vmul.f32 %v529, %v838
        %v919 = vmul.f32 %v531, %v839
        %v920 = vmul.f32 %v600, %v840
        %v921 = vmul.f32 %v602, %v841
        %v922 = vmul.f32 %v671, %v842
        %v923 = vmul.f32 %v673, %v843
        %v924 = vmul.f32 %v742, %v844
        %v925 = vmul.f32 %v744, %v845
        %v926 = vmul.f32 %v916, %v906
        %v927 = vmul.f32 %v917, %v907
        %v928 = vmul.f32 %v918, %v908
        %v929 = vmul.f32 %v919, %v909
        %v930 = vmul.f32 %v920, %v910
        %v931 = vmul.f32 %v921, %v911
        %v932 = vmul.f32 %v922, %v912
        %v933 = vmul.f32 %v923, %v913
        %v934 = vmul.f32 %v924, %v914
        %v935 = vmul.f32 %v925, %v915
        %v936 = vld [vmem:[%s3] sm:$0xff]
        %v937 = vld [vmem:[%s3 + $0x8] sm:$0xff]
        %v938 = vld [vmem:[%s3 + $0x10] sm:$0xff]
        %v939 = vld [vmem:[%s3 + $0x18] sm:$0xff]
        %v940 = vld [vmem:[%s3 + $0x20] sm:$0xff]
        %v941 = vld [vmem:[%s3 + $0x28] sm:$0xff]
        %v942 = vld [vmem:[%s3 + $0x30] sm:$0xff]
        %v943 = vld [vmem:[%s3 + $0x38] sm:$0xff]
        %v944 = vld [vmem:[%s3 + $0x40] sm:$0xff]
        %v945 = vld [vmem:[%s3 + $0x48] sm:$0xff]
        %v946 = vld [vmem:[%s3 + $0x50] sm:$0xff]
        %v947 = vld [vmem:[%s3 + $0x58] sm:$0xff]
        %v948 = vld [vmem:[%s3 + $0x60] sm:$0xff]
        %v949 = vld [vmem:[%s3 + $0x68] sm:$0xff]
        %v950 = vld [vmem:[%s3 + $0x70] sm:$0xff]
        %v951 = vld [vmem:[%s3 + $0x78] sm:$0xff]
        %v952 = vld [vmem:[%s3 + $0x80] sm:$0xff]
        %v953 = vld [vmem:[%s3 + $0x88] sm:$0xff]
        %v954 = vld [vmem:[%s3 + $0x90] sm:$0xff]
        %v955 = vld [vmem:[%s3 + $0x98] sm:$0xff]
        %v956 = vld [vmem:[%s3 + $0xa0] sm:$0xff]
        %v957 = vld [vmem:[%s3 + $0xa8] sm:$0xff]
        %v958 = vld [vmem:[%s3 + $0xb0] sm:$0xff]
        %v959 = vld [vmem:[%s3 + $0xb8] sm:$0xff]
        %v960 = vld [vmem:[%s3 + $0xc0] sm:$0xff]
        %v961 = vld [vmem:[%s3 + $0xc8] sm:$0xff]
        %v962 = vld [vmem:[%s3 + $0xd0] sm:$0xff]
        %v963 = vld [vmem:[%s3 + $0xd8] sm:$0xff]
        %v964 = vld [vmem:[%s3 + $0xe0] sm:$0xff]
        %v965 = vld [vmem:[%s3 + $0xe8] sm:$0xff]
        %v966 = vld [vmem:[%s3 + $0xf0] sm:$0xff]
        %v967 = vld [vmem:[%s3 + $0xf8] sm:$0xff]
        %v968 = vld [vmem:[%s3 + $0x100] sm:$0xff]
        %v969 = vld [vmem:[%s3 + $0x108] sm:$0xff]
        %v970 = vld [vmem:[%s3 + $0x110] sm:$0xff]
        %v971 = vld [vmem:[%s3 + $0x118] sm:$0xff]
        %v972 = vld [vmem:[%s3 + $0x120] sm:$0xff]
        %v973 = vld [vmem:[%s3 + $0x128] sm:$0xff]
        %v974 = vld [vmem:[%s3 + $0x130] sm:$0xff]
        %v975 = vld [vmem:[%s3 + $0x138] sm:$0xff]
        %v976 = vld [vmem:[%s3 + $0x140] sm:$0xff]
        %v977 = vld [vmem:[%s3 + $0x148] sm:$0xff]
        %v978 = vld [vmem:[%s3 + $0x150] sm:$0xff]
        %v979 = vld [vmem:[%s3 + $0x158] sm:$0xff]
        %v980 = vld [vmem:[%s3 + $0x160] sm:$0xff]
        %v981 = vld [vmem:[%s3 + $0x168] sm:$0xff]
        %v982 = vld [vmem:[%s3 + $0x170] sm:$0xff]
        %v983 = vld [vmem:[%s3 + $0x178] sm:$0xff]
        %v984 = vld [vmem:[%s3 + $0x180] sm:$0xff]
        %v985 = vld [vmem:[%s3 + $0x188] sm:$0xff]
        %v986 = vld [vmem:[%s3 + $0x190] sm:$0xff]
        %v987 = vld [vmem:[%s3 + $0x198] sm:$0xff]
        %v988 = vld [vmem:[%s3 + $0x1a0] sm:$0xff]
        %v989 = vld [vmem:[%s3 + $0x1a8] sm:$0xff]
        %v990 = vld [vmem:[%s3 + $0x1b0] sm:$0xff]
        %v991 = vld [vmem:[%s3 + $0x1b8] sm:$0xff]
        %v992 = vld [vmem:[%s3 + $0x1c0] sm:$0xff]
        %v993 = vld [vmem:[%s3 + $0x1c8] sm:$0xff]
        %v994 = vld [vmem:[%s3 + $0x1d0] sm:$0xff]
        %v995 = vld [vmem:[%s3 + $0x1d8] sm:$0xff]
        %v996 = vld [vmem:[%s3 + $0x1e0] sm:$0xff]
        %v997 = vld [vmem:[%s3 + $0x1e8] sm:$0xff]
        %v998 = vld [vmem:[%s3 + $0x1f0] sm:$0xff]
        %v999 = vld [vmem:[%s3 + $0x1f8] sm:$0xff]
        %v1000 = vld [vmem:[%s3 + $0x200] sm:$0xff]
        %v1001 = vld [vmem:[%s3 + $0x208] sm:$0xff]
        %v1002 = vld [vmem:[%s3 + $0x210] sm:$0xff]
        %v1003 = vld [vmem:[%s3 + $0x218] sm:$0xff]
        %v1004 = vld [vmem:[%s3 + $0x220] sm:$0xff]
        %v1005 = vld [vmem:[%s3 + $0x228] sm:$0xff]
        %v1006 = vld [vmem:[%s3 + $0x230] sm:$0xff]
        %v1007 = vld [vmem:[%s3 + $0x238] sm:$0xff]
        %v1008 = vld [vmem:[%s3 + $0x240] sm:$0xff]
        %v1009 = vld [vmem:[%s3 + $0x248] sm:$0xff]
        %v1010 = vld [vmem:[%s3 + $0x250] sm:$0xff]
        %v1011 = vld [vmem:[%s3 + $0x258] sm:$0xff]
        %v1012 = vld [vmem:[%s3 + $0x260] sm:$0xff]
        %v1013 = vld [vmem:[%s3 + $0x268] sm:$0xff]
        %v1014 = vld [vmem:[%s3 + $0x270] sm:$0xff]
        %v1015 = vld [vmem:[%s3 + $0x278] sm:$0xff]
        %v1016 = vld [vmem:[%s3 + $0x280] sm:$0xff]
        %v1017 = vld [vmem:[%s3 + $0x288] sm:$0xff]
        %v1018 = vld [vmem:[%s3 + $0x290] sm:$0xff]
        %v1019 = vld [vmem:[%s3 + $0x298] sm:$0xff]
        %v1020 = vld [vmem:[%s3 + $0x2a0] sm:$0xff]
        %v1021 = vld [vmem:[%s3 + $0x2a8] sm:$0xff]
        %v1022 = vld [vmem:[%s3 + $0x2b0] sm:$0xff]
        %v1023 = vld [vmem:[%s3 + $0x2b8] sm:$0xff]
        %v1024 = vld [vmem:[%s3 + $0x2c0] sm:$0xff]
        %v1025 = vld [vmem:[%s3 + $0x2c8] sm:$0xff]
        %v1026 = vld [vmem:[%s3 + $0x2d0] sm:$0xff]
        %v1027 = vld [vmem:[%s3 + $0x2d8] sm:$0xff]
        %v1028 = vld [vmem:[%s3 + $0x2e0] sm:$0xff]
        %v1029 = vld [vmem:[%s3 + $0x2e8] sm:$0xff]
        %v1030 = vld [vmem:[%s3 + $0x2f0] sm:$0xff]
        %v1031 = vld [vmem:[%s3 + $0x2f8] sm:$0xff]
        %v1032 = vld [vmem:[%s3 + $0x300] sm:$0xff]
        %v1033 = vld [vmem:[%s3 + $0x308] sm:$0xff]
        %v1034 = vld [vmem:[%s3 + $0x310] sm:$0xff]
        %v1035 = vld [vmem:[%s3 + $0x318] sm:$0xff]
        %v1036 = vld [vmem:[%s3 + $0x320] sm:$0xff]
        %v1037 = vld [vmem:[%s3 + $0x328] sm:$0xff]
        %v1038 = vld [vmem:[%s3 + $0x330] sm:$0xff]
        %v1039 = vld [vmem:[%s3 + $0x338] sm:$0xff]
        %v1040 = vld [vmem:[%s3 + $0x340] sm:$0xff]
        %v1041 = vld [vmem:[%s3 + $0x348] sm:$0xff]
        %v1042 = vld [vmem:[%s3 + $0x350] sm:$0xff]
        %v1043 = vld [vmem:[%s3 + $0x358] sm:$0xff]
        %v1044 = vld [vmem:[%s3 + $0x360] sm:$0xff]
        %v1045 = vld [vmem:[%s3 + $0x368] sm:$0xff]
        %v1046 = vld [vmem:[%s3 + $0x370] sm:$0xff]
        %v1047 = vld [vmem:[%s3 + $0x378] sm:$0xff]
        %v1048 = vld [vmem:[%s3 + $0x380] sm:$0xff]
        %v1049 = vld [vmem:[%s3 + $0x388] sm:$0xff]
        %v1050 = vld [vmem:[%s3 + $0x390] sm:$0xff]
        %v1051 = vld [vmem:[%s3 + $0x398] sm:$0xff]
        %v1052 = vld [vmem:[%s3 + $0x3a0] sm:$0xff]
        %v1053 = vld [vmem:[%s3 + $0x3a8] sm:$0xff]
        %v1054 = vld [vmem:[%s3 + $0x3b0] sm:$0xff]
        %v1055 = vld [vmem:[%s3 + $0x3b8] sm:$0xff]
        %v1056 = vld [vmem:[%s3 + $0x3c0] sm:$0xff]
        %v1057 = vld [vmem:[%s3 + $0x3c8] sm:$0xff]
        %v1058 = vld [vmem:[%s3 + $0x3d0] sm:$0xff]
        %v1059 = vld [vmem:[%s3 + $0x3d8] sm:$0xff]
        %v1060 = vld [vmem:[%s3 + $0x3e0] sm:$0xff]
        %v1061 = vld [vmem:[%s3 + $0x3e8] sm:$0xff]
        %v1062 = vld [vmem:[%s3 + $0x3f0] sm:$0xff]
        %v1063 = vld [vmem:[%s3 + $0x3f8] sm:$0xff]
        %v1064 = vld [vmem:[%s3 + $0x400] sm:$0xff]
        %v1065 = vld [vmem:[%s3 + $0x408] sm:$0xff]
        %v1066 = vld [vmem:[%s3 + $0x410] sm:$0xff]
        %v1067 = vld [vmem:[%s3 + $0x418] sm:$0xff]
        %v1068 = vld [vmem:[%s3 + $0x420] sm:$0xff]
        %v1069 = vld [vmem:[%s3 + $0x428] sm:$0xff]
        %v1070 = vld [vmem:[%s3 + $0x430] sm:$0xff]
        %v1071 = vld [vmem:[%s3 + $0x438] sm:$0xff]
        %v1072 = vld [vmem:[%s3 + $0x440] sm:$0xff]
        %v1073 = vld [vmem:[%s3 + $0x448] sm:$0xff]
        %v1074 = vld [vmem:[%s3 + $0x450] sm:$0xff]
        %v1075 = vld [vmem:[%s3 + $0x458] sm:$0xff]
        %v1076 = vld [vmem:[%s3 + $0x460] sm:$0xff]
        %v1077 = vld [vmem:[%s3 + $0x468] sm:$0xff]
        %v1078 = vld [vmem:[%s3 + $0x470] sm:$0xff]
        %v1079 = vld [vmem:[%s3 + $0x478] sm:$0xff]
        %v1080 = vld [vmem:[%s3 + $0x480] sm:$0xff]
        %v1081 = vld [vmem:[%s3 + $0x488] sm:$0xff]
        %v1082 = vld [vmem:[%s3 + $0x490] sm:$0xff]
        %v1083 = vld [vmem:[%s3 + $0x498] sm:$0xff]
        %v1084 = vld [vmem:[%s3 + $0x4a0] sm:$0xff]
        %v1085 = vld [vmem:[%s3 + $0x4a8] sm:$0xff]
        %v1086 = vld [vmem:[%s3 + $0x4b0] sm:$0xff]
        %v1087 = vld [vmem:[%s3 + $0x4b8] sm:$0xff]
        %v1088 = vld [vmem:[%s3 + $0x4c0] sm:$0xff]
        %v1089 = vld [vmem:[%s3 + $0x4c8] sm:$0xff]
        %v1090 = vld [vmem:[%s3 + $0x4d0] sm:$0xff]
        %v1091 = vld [vmem:[%s3 + $0x4d8] sm:$0xff]
        %v1092 = vld [vmem:[%s3 + $0x4e0] sm:$0xff]
        %v1093 = vld [vmem:[%s3 + $0x4e8] sm:$0xff]
        %v1094 = vld [vmem:[%s3 + $0x4f0] sm:$0xff]
        %v1095 = vld [vmem:[%s3 + $0x4f8] sm:$0xff]
        %v1096 = vld [vmem:[%s4] sm:$0x1]
        %v1098 = vlaneseq
        %v1099 = vshrl.u32 %v1098, 7
        %v1100 = vsub.s32 0, %v1099
        %v1101 = vrot.slane %v1096, %v1100
        %1103 = vmatprep.subr.mxu0 0.0
        %1104 = vmatpush1.msra.mxu0 %v936
        %1105 = vmatprep.subr.mxu0 0.0
        %1106 = vmatpush1.msra.mxu0 %v937
        %1107 = vmatprep.subr.mxu0 0.0
        %1108 = vmatpush1.msra.mxu0 %v938
        %1109 = vmatprep.subr.mxu0 0.0
        %1110 = vmatpush1.msra.mxu0 %v939
        %1111 = vmatprep.subr.mxu0 0.0
        %1112 = vmatpush1.msra.mxu0 %v940
        %1113 = vmatprep.subr.mxu0 0.0
        %1114 = vmatpush1.msra.mxu0 %v941
        %1115 = vmatprep.subr.mxu0 0.0
        %1116 = vmatpush1.msra.mxu0 %v942
        %1117 = vmatprep.subr.mxu0 0.0
        %1118 = vmatpush1.msra.mxu0 %v943
        %1119 = vmatprep.subr.mxu0 0.0
        %1120 = vmatpush1.msra.mxu0 %v944
        %1121 = vmatprep.subr.mxu0 0.0
        %1122 = vmatpush1.msra.mxu0 %v945
        %1123 = vmatprep.subr.mxu0 0.0
        %1124 = vmatpush1.msra.mxu0 %v946
        %1125 = vmatprep.subr.mxu0 0.0
        %1126 = vmatpush1.msra.mxu0 %v947
        %1127 = vmatprep.subr.mxu0 0.0
        %1128 = vmatpush1.msra.mxu0 %v948
        %1129 = vmatprep.subr.mxu0 0.0
        %1130 = vmatpush1.msra.mxu0 %v949
        %1131 = vmatprep.subr.mxu0 0.0
        %1132 = vmatpush1.msra.mxu0 %v950
        %1133 = vmatprep.subr.mxu0 0.0
        %1134 = vmatpush1.msra.mxu0 %v951
        %1135 = vmatprep.subr.mxu0 0.0
        %1136 = vmatpush1.msra.mxu0 %v952
        %1137 = vmatprep.subr.mxu0 0.0
        %1138 = vmatpush1.msra.mxu0 %v953
        %1139 = vmatprep.subr.mxu0 0.0
        %1140 = vmatpush1.msra.mxu0 %v954
        %1141 = vmatprep.subr.mxu0 0.0
        %1142 = vmatpush1.msra.mxu0 %v955
        %1143 = vmatprep.subr.mxu0 0.0
        %1144 = vmatpush1.msra.mxu0 %v956
        %1145 = vmatprep.subr.mxu0 0.0
        %1146 = vmatpush1.msra.mxu0 %v957
        %1147 = vmatprep.subr.mxu0 0.0
        %1148 = vmatpush1.msra.mxu0 %v958
        %1149 = vmatprep.subr.mxu0 0.0
        %1150 = vmatpush1.msra.mxu0 %v959
        %1151 = vmatprep.subr.mxu0 0.0
        %1152 = vmatpush1.msra.mxu0 %v960
        %1153 = vmatprep.subr.mxu0 0.0
        %1154 = vmatpush1.msra.mxu0 %v961
        %1155 = vmatprep.subr.mxu0 0.0
        %1156 = vmatpush1.msra.mxu0 %v962
        %1157 = vmatprep.subr.mxu0 0.0
        %1158 = vmatpush1.msra.mxu0 %v963
        %1159 = vmatprep.subr.mxu0 0.0
        %1160 = vmatpush1.msra.mxu0 %v964
        %1161 = vmatprep.subr.mxu0 0.0
        %1162 = vmatpush1.msra.mxu0 %v965
        %1163 = vmatprep.subr.mxu0 0.0
        %1164 = vmatpush1.msra.mxu0 %v966
        %1165 = vmatprep.subr.mxu0 0.0
        %1166 = vmatpush1.msra.mxu0 %v967
        %1167 = vmatprep.mubr.f32.mxu0 %v927
        %1168 = vmatmul.mubr.f32.gmra.mrb[0].mxu0 %v926
        %v1169 = vpop.f32.mrb[0].mxu0
        %v1170 = vadd.f32 %v1101, %v1169
        %v1171 = vpop.f32.mrb[0].mxu0
        %1172 = vdwg.mxu0
        %1173 = vmatprep.subr.mxu0 0.0
        %1174 = vmatpush1.msra.mxu0 %v968
        %1175 = vmatprep.subr.mxu0 0.0
        %1176 = vmatpush1.msra.mxu0 %v969
        %1177 = vmatprep.subr.mxu0 0.0
        %1178 = vmatpush1.msra.mxu0 %v970
        %1179 = vmatprep.subr.mxu0 0.0
        %1180 = vmatpush1.msra.mxu0 %v971
        %1181 = vmatprep.subr.mxu0 0.0
        %1182 = vmatpush1.msra.mxu0 %v972
        %1183 = vmatprep.subr.mxu0 0.0
        %1184 = vmatpush1.msra.mxu0 %v973
        %1185 = vmatprep.subr.mxu0 0.0
        %1186 = vmatpush1.msra.mxu0 %v974
        %1187 = vmatprep.subr.mxu0 0.0
        %1188 = vmatpush1.msra.mxu0 %v975
        %1189 = vmatprep.subr.mxu0 0.0
        %1190 = vmatpush1.msra.mxu0 %v976
        %1191 = vmatprep.subr.mxu0 0.0
        %1192 = vmatpush1.msra.mxu0 %v977
        %1193 = vmatprep.subr.mxu0 0.0
        %1194 = vmatpush1.msra.mxu0 %v978
        %1195 = vmatprep.subr.mxu0 0.0
        %1196 = vmatpush1.msra.mxu0 %v979
        %1197 = vmatprep.subr.mxu0 0.0
        %1198 = vmatpush1.msra.mxu0 %v980
        %1199 = vmatprep.subr.mxu0 0.0
        %1200 = vmatpush1.msra.mxu0 %v981
        %1201 = vmatprep.subr.mxu0 0.0
        %1202 = vmatpush1.msra.mxu0 %v982
        %1203 = vmatprep.subr.mxu0 0.0
        %1204 = vmatpush1.msra.mxu0 %v983
        %1205 = vmatprep.subr.mxu0 0.0
        %1206 = vmatpush1.msra.mxu0 %v984
        %1207 = vmatprep.subr.mxu0 0.0
        %1208 = vmatpush1.msra.mxu0 %v985
        %1209 = vmatprep.subr.mxu0 0.0
        %1210 = vmatpush1.msra.mxu0 %v986
        %1211 = vmatprep.subr.mxu0 0.0
        %1212 = vmatpush1.msra.mxu0 %v987
        %1213 = vmatprep.subr.mxu0 0.0
        %1214 = vmatpush1.msra.mxu0 %v988
        %1215 = vmatprep.subr.mxu0 0.0
        %1216 = vmatpush1.msra.mxu0 %v989
        %1217 = vmatprep.subr.mxu0 0.0
        %1218 = vmatpush1.msra.mxu0 %v990
        %1219 = vmatprep.subr.mxu0 0.0
        %1220 = vmatpush1.msra.mxu0 %v991
        %1221 = vmatprep.subr.mxu0 0.0
        %1222 = vmatpush1.msra.mxu0 %v992
        %1223 = vmatprep.subr.mxu0 0.0
        %1224 = vmatpush1.msra.mxu0 %v993
        %1225 = vmatprep.subr.mxu0 0.0
        %1226 = vmatpush1.msra.mxu0 %v994
        %1227 = vmatprep.subr.mxu0 0.0
        %1228 = vmatpush1.msra.mxu0 %v995
        %1229 = vmatprep.subr.mxu0 0.0
        %1230 = vmatpush1.msra.mxu0 %v996
        %1231 = vmatprep.subr.mxu0 0.0
        %1232 = vmatpush1.msra.mxu0 %v997
        %1233 = vmatprep.subr.mxu0 0.0
        %1234 = vmatpush1.msra.mxu0 %v998
        %1235 = vmatprep.subr.mxu0 0.0
        %1236 = vmatpush1.msra.mxu0 %v999
        %1237 = vmatprep.mubr.f32.mxu0 %v929
        %1238 = vmatmul.mubr.f32.gmra.mrb[0].mxu0 %v928
        %v1239 = vpop.f32.mrb[0].mxu0
        %v1240 = vadd.f32 %v1170, %v1239
        %v1241 = vpop.f32.mrb[0].mxu0
        %1242 = vdwg.mxu0
        %1243 = vmatprep.subr.mxu0 0.0
        %1244 = vmatpush1.msra.mxu0 %v1000
        %1245 = vmatprep.subr.mxu0 0.0
        %1246 = vmatpush1.msra.mxu0 %v1001
        %1247 = vmatprep.subr.mxu0 0.0
        %1248 = vmatpush1.msra.mxu0 %v1002
        %1249 = vmatprep.subr.mxu0 0.0
        %1250 = vmatpush1.msra.mxu0 %v1003
        %1251 = vmatprep.subr.mxu0 0.0
        %1252 = vmatpush1.msra.mxu0 %v1004
        %1253 = vmatprep.subr.mxu0 0.0
        %1254 = vmatpush1.msra.mxu0 %v1005
        %1255 = vmatprep.subr.mxu0 0.0
        %1256 = vmatpush1.msra.mxu0 %v1006
        %1257 = vmatprep.subr.mxu0 0.0
        %1258 = vmatpush1.msra.mxu0 %v1007
        %1259 = vmatprep.subr.mxu0 0.0
        %1260 = vmatpush1.msra.mxu0 %v1008
        %1261 = vmatprep.subr.mxu0 0.0
        %1262 = vmatpush1.msra.mxu0 %v1009
        %1263 = vmatprep.subr.mxu0 0.0
        %1264 = vmatpush1.msra.mxu0 %v1010
        %1265 = vmatprep.subr.mxu0 0.0
        %1266 = vmatpush1.msra.mxu0 %v1011
        %1267 = vmatprep.subr.mxu0 0.0
        %1268 = vmatpush1.msra.mxu0 %v1012
        %1269 = vmatprep.subr.mxu0 0.0
        %1270 = vmatpush1.msra.mxu0 %v1013
        %1271 = vmatprep.subr.mxu0 0.0
        %1272 = vmatpush1.msra.mxu0 %v1014
        %1273 = vmatprep.subr.mxu0 0.0
        %1274 = vmatpush1.msra.mxu0 %v1015
        %1275 = vmatprep.subr.mxu0 0.0
        %1276 = vmatpush1.msra.mxu0 %v1016
        %1277 = vmatprep.subr.mxu0 0.0
        %1278 = vmatpush1.msra.mxu0 %v1017
        %1279 = vmatprep.subr.mxu0 0.0
        %1280 = vmatpush1.msra.mxu0 %v1018
        %1281 = vmatprep.subr.mxu0 0.0
        %1282 = vmatpush1.msra.mxu0 %v1019
        %1283 = vmatprep.subr.mxu0 0.0
        %1284 = vmatpush1.msra.mxu0 %v1020
        %1285 = vmatprep.subr.mxu0 0.0
        %1286 = vmatpush1.msra.mxu0 %v1021
        %1287 = vmatprep.subr.mxu0 0.0
        %1288 = vmatpush1.msra.mxu0 %v1022
        %1289 = vmatprep.subr.mxu0 0.0
        %1290 = vmatpush1.msra.mxu0 %v1023
        %1291 = vmatprep.subr.mxu0 0.0
        %1292 = vmatpush1.msra.mxu0 %v1024
        %1293 = vmatprep.subr.mxu0 0.0
        %1294 = vmatpush1.msra.mxu0 %v1025
        %1295 = vmatprep.subr.mxu0 0.0
        %1296 = vmatpush1.msra.mxu0 %v1026
        %1297 = vmatprep.subr.mxu0 0.0
        %1298 = vmatpush1.msra.mxu0 %v1027
        %1299 = vmatprep.subr.mxu0 0.0
        %1300 = vmatpush1.msra.mxu0 %v1028
        %1301 = vmatprep.subr.mxu0 0.0
        %1302 = vmatpush1.msra.mxu0 %v1029
        %1303 = vmatprep.subr.mxu0 0.0
        %1304 = vmatpush1.msra.mxu0 %v1030
        %1305 = vmatprep.subr.mxu0 0.0
        %1306 = vmatpush1.msra.mxu0 %v1031
        %1307 = vmatprep.mubr.f32.mxu0 %v931
        %1308 = vmatmul.mubr.f32.gmra.mrb[0].mxu0 %v930
        %v1309 = vpop.f32.mrb[0].mxu0
        %v1310 = vadd.f32 %v1240, %v1309
        %v1311 = vpop.f32.mrb[0].mxu0
        %1312 = vdwg.mxu0
        %1313 = vmatprep.subr.mxu0 0.0
        %1314 = vmatpush1.msra.mxu0 %v1032
        %1315 = vmatprep.subr.mxu0 0.0
        %1316 = vmatpush1.msra.mxu0 %v1033
        %1317 = vmatprep.subr.mxu0 0.0
        %1318 = vmatpush1.msra.mxu0 %v1034
        %1319 = vmatprep.subr.mxu0 0.0
        %1320 = vmatpush1.msra.mxu0 %v1035
        %1321 = vmatprep.subr.mxu0 0.0
        %1322 = vmatpush1.msra.mxu0 %v1036
        %1323 = vmatprep.subr.mxu0 0.0
        %1324 = vmatpush1.msra.mxu0 %v1037
        %1325 = vmatprep.subr.mxu0 0.0
        %1326 = vmatpush1.msra.mxu0 %v1038
        %1327 = vmatprep.subr.mxu0 0.0
        %1328 = vmatpush1.msra.mxu0 %v1039
        %1329 = vmatprep.subr.mxu0 0.0
        %1330 = vmatpush1.msra.mxu0 %v1040
        %1331 = vmatprep.subr.mxu0 0.0
        %1332 = vmatpush1.msra.mxu0 %v1041
        %1333 = vmatprep.subr.mxu0 0.0
        %1334 = vmatpush1.msra.mxu0 %v1042
        %1335 = vmatprep.subr.mxu0 0.0
        %1336 = vmatpush1.msra.mxu0 %v1043
        %1337 = vmatprep.subr.mxu0 0.0
        %1338 = vmatpush1.msra.mxu0 %v1044
        %1339 = vmatprep.subr.mxu0 0.0
        %1340 = vmatpush1.msra.mxu0 %v1045
        %1341 = vmatprep.subr.mxu0 0.0
        %1342 = vmatpush1.msra.mxu0 %v1046
        %1343 = vmatprep.subr.mxu0 0.0
        %1344 = vmatpush1.msra.mxu0 %v1047
        %1345 = vmatprep.subr.mxu0 0.0
        %1346 = vmatpush1.msra.mxu0 %v1048
        %1347 = vmatprep.subr.mxu0 0.0
        %1348 = vmatpush1.msra.mxu0 %v1049
        %1349 = vmatprep.subr.mxu0 0.0
        %1350 = vmatpush1.msra.mxu0 %v1050
        %1351 = vmatprep.subr.mxu0 0.0
        %1352 = vmatpush1.msra.mxu0 %v1051
        %1353 = vmatprep.subr.mxu0 0.0
        %1354 = vmatpush1.msra.mxu0 %v1052
        %1355 = vmatprep.subr.mxu0 0.0
        %1356 = vmatpush1.msra.mxu0 %v1053
        %1357 = vmatprep.subr.mxu0 0.0
        %1358 = vmatpush1.msra.mxu0 %v1054
        %1359 = vmatprep.subr.mxu0 0.0
        %1360 = vmatpush1.msra.mxu0 %v1055
        %1361 = vmatprep.subr.mxu0 0.0
        %1362 = vmatpush1.msra.mxu0 %v1056
        %1363 = vmatprep.subr.mxu0 0.0
        %1364 = vmatpush1.msra.mxu0 %v1057
        %1365 = vmatprep.subr.mxu0 0.0
        %1366 = vmatpush1.msra.mxu0 %v1058
        %1367 = vmatprep.subr.mxu0 0.0
        %1368 = vmatpush1.msra.mxu0 %v1059
        %1369 = vmatprep.subr.mxu0 0.0
        %1370 = vmatpush1.msra.mxu0 %v1060
        %1371 = vmatprep.subr.mxu0 0.0
        %1372 = vmatpush1.msra.mxu0 %v1061
        %1373 = vmatprep.subr.mxu0 0.0
        %1374 = vmatpush1.msra.mxu0 %v1062
        %1375 = vmatprep.subr.mxu0 0.0
        %1376 = vmatpush1.msra.mxu0 %v1063
        %1377 = vmatprep.mubr.f32.mxu0 %v933
        %1378 = vmatmul.mubr.f32.gmra.mrb[0].mxu0 %v932
        %v1379 = vpop.f32.mrb[0].mxu0
        %v1380 = vadd.f32 %v1310, %v1379
        %v1381 = vpop.f32.mrb[0].mxu0
        %1382 = vdwg.mxu0
        %1383 = vmatprep.subr.mxu0 0.0
        %1384 = vmatpush1.msra.mxu0 %v1064
        %1385 = vmatprep.subr.mxu0 0.0
        %1386 = vmatpush1.msra.mxu0 %v1065
        %1387 = vmatprep.subr.mxu0 0.0
        %1388 = vmatpush1.msra.mxu0 %v1066
        %1389 = vmatprep.subr.mxu0 0.0
        %1390 = vmatpush1.msra.mxu0 %v1067
        %1391 = vmatprep.subr.mxu0 0.0
        %1392 = vmatpush1.msra.mxu0 %v1068
        %1393 = vmatprep.subr.mxu0 0.0
        %1394 = vmatpush1.msra.mxu0 %v1069
        %1395 = vmatprep.subr.mxu0 0.0
        %1396 = vmatpush1.msra.mxu0 %v1070
        %1397 = vmatprep.subr.mxu0 0.0
        %1398 = vmatpush1.msra.mxu0 %v1071
        %1399 = vmatprep.subr.mxu0 0.0
        %1400 = vmatpush1.msra.mxu0 %v1072
        %1401 = vmatprep.subr.mxu0 0.0
        %1402 = vmatpush1.msra.mxu0 %v1073
        %1403 = vmatprep.subr.mxu0 0.0
        %1404 = vmatpush1.msra.mxu0 %v1074
        %1405 = vmatprep.subr.mxu0 0.0
        %1406 = vmatpush1.msra.mxu0 %v1075
        %1407 = vmatprep.subr.mxu0 0.0
        %1408 = vmatpush1.msra.mxu0 %v1076
        %1409 = vmatprep.subr.mxu0 0.0
        %1410 = vmatpush1.msra.mxu0 %v1077
        %1411 = vmatprep.subr.mxu0 0.0
        %1412 = vmatpush1.msra.mxu0 %v1078
        %1413 = vmatprep.subr.mxu0 0.0
        %1414 = vmatpush1.msra.mxu0 %v1079
        %1415 = vmatprep.subr.mxu0 0.0
        %1416 = vmatpush1.msra.mxu0 %v1080
        %1417 = vmatprep.subr.mxu0 0.0
        %1418 = vmatpush1.msra.mxu0 %v1081
        %1419 = vmatprep.subr.mxu0 0.0
        %1420 = vmatpush1.msra.mxu0 %v1082
        %1421 = vmatprep.subr.mxu0 0.0
        %1422 = vmatpush1.msra.mxu0 %v1083
        %1423 = vmatprep.subr.mxu0 0.0
        %1424 = vmatpush1.msra.mxu0 %v1084
        %1425 = vmatprep.subr.mxu0 0.0
        %1426 = vmatpush1.msra.mxu0 %v1085
        %1427 = vmatprep.subr.mxu0 0.0
        %1428 = vmatpush1.msra.mxu0 %v1086
        %1429 = vmatprep.subr.mxu0 0.0
        %1430 = vmatpush1.msra.mxu0 %v1087
        %1431 = vmatprep.subr.mxu0 0.0
        %1432 = vmatpush1.msra.mxu0 %v1088
        %1433 = vmatprep.subr.mxu0 0.0
        %1434 = vmatpush1.msra.mxu0 %v1089
        %1435 = vmatprep.subr.mxu0 0.0
        %1436 = vmatpush1.msra.mxu0 %v1090
        %1437 = vmatprep.subr.mxu0 0.0
        %1438 = vmatpush1.msra.mxu0 %v1091
        %1439 = vmatprep.subr.mxu0 0.0
        %1440 = vmatpush1.msra.mxu0 %v1092
        %1441 = vmatprep.subr.mxu0 0.0
        %1442 = vmatpush1.msra.mxu0 %v1093
        %1443 = vmatprep.subr.mxu0 0.0
        %1444 = vmatpush1.msra.mxu0 %v1094
        %1445 = vmatprep.subr.mxu0 0.0
        %1446 = vmatpush1.msra.mxu0 %v1095
        %1447 = vmatprep.mubr.f32.mxu0 %v935
        %1448 = vmatmul.mubr.f32.gmra.mrb[0].mxu0 %v934
        %v1449 = vpop.f32.mrb[0].mxu0
        %v1450 = vadd.f32 %v1380, %v1449
        %v1451 = vpop.f32.mrb[0].mxu0
        %1452 = vdwg.mxu0
        %vm1453 = vcmask 326656
        %1454 = vst.msk [vmem:[%s215] sm:$0xff] %vm1453, %v1450
        %s1455 = sand.u32 %s137, 1
        %s1456 = scalar_lea.sflag [#allocation3], %s1455
        %s1457 = sand.u32 %s137, 1
        %s1458 = smul.addr %s1457, 8
        %s1459 = scalar_lea.vmem [#allocation2], %s1458
        // Predicated region
        $region41: #{cnn_extractor_forward.1} parent=39 // pred_check
          %p1460 = pneg %p147
        $region42: #{cnn_extractor_forward.1} parent=39 // pred_check_branch
          %1462 = sbr.rel (%p1460) target = $region44
        $region43: #{cnn_extractor_forward.1} parent=39 // pred_region
          %s1464 = ssub.s32 128, 128
          %1465 = vsyncadd %s1456, %s1464
          %s1466 = smul.addr %s19, 128
          %s1467 = scalar_lea.hbm %s5, %s1466
          %s1469 = sshll.u32 %s1459, 4
          %s1470 = int_to_ptr.vmem [resolvable:$true] %s1469
          %1472 = dma.vmem_to_hbm [thread:$0]  %s1470, 128, %s1467, %s1456
        $region44: #{cnn_extractor_forward.1} parent=39 // pred_fallthru
          _
      $region40: #{cnn_extractor_forward.1} parent=5 // pred_fallthru
        _
      %p1473 = scmp.le.s32.totalorder 2, %s14
      // Predicated region
      $region45: #{cnn_extractor_forward.1} parent=5 // pred_check
        %p1474 = pneg %p1473
      $region46: #{cnn_extractor_forward.1} parent=5 // pred_check_branch
        %1476 = sbr.rel (%p1474) target = $region48
      $region47: #{cnn_extractor_forward.1} parent=5 // pred_region
        %s1477 = ssub.s32 %s14, 2
        // Predicated region
        $region49: #{cnn_extractor_forward.1} parent=47 // pred_check
          %p1478 = pneg %p153
        $region50: #{cnn_extractor_forward.1} parent=47 // pred_check_branch
          %1480 = sbr.rel (%p1478) target = $region52
        $region51: #{cnn_extractor_forward.1} parent=47 // pred_region
          %s1481 = sand.u32 %s138, 1
          %s1482 = scalar_lea.sflag [#allocation3], %s1481
          %s1483 = sand.u32 %s138, 1
          %s1484 = smul.addr %s1483, 8
          %s1485 = scalar_lea.vmem [#allocation2], %s1484
          %1486 = dma.done %s1482, 128
        $region52: #{cnn_extractor_forward.1} parent=47 // pred_fallthru
          _
      $region48: #{cnn_extractor_forward.1} parent=5 // pred_fallthru
        _
    $region6: #{cnn_extractor_forward.1} parent=1 // loop_footer
      %s18 = sadd.s32 1, %s14
    $region7: #{cnn_extractor_forward.1} parent=1 // loop_footer_branch
      %13 = sbr.rel target = $region3
    $region8: #{cnn_extractor_forward.1} parent=1 // loop_exit
      _
    %1487 = vsyncpa [#allocation3], 1
    %s1488 = scalar_lea.sflag [#allocation3], 1
    %1489 = vsyncpa %s1488, 1

</llo_original>
